<compile_context>
chip_gen: v7x
topology: tpu7x:2x2x1
jax: 0.10.0
libtpu: 0.0.40
codegen_flags: <defaults>
</compile_context>

<pallas_src>
import functools

import numpy as np
import jax
import jax.numpy as jnp
from jax.experimental import pallas as pl
from jax.experimental.pallas import tpu as pltpu


# ----------------------------------------------------------------------------
# Depth-2 log-signature (signatory.logsignature(..., depth=2, basepoint=True)):
# level-1 = total increment from the zero basepoint (== endpoint),
# level-2 = Levy areas for word pairs (i, j), i < j.
# TODO(synk): signature depths > 2 have no closed form implemented here.
# ----------------------------------------------------------------------------
def depth2_logsig(segment):
    # segment: (B, m, d) path points; a zero basepoint is prepended.
    B, m, d = segment.shape
    pts = jnp.concatenate([jnp.zeros((B, 1, d), segment.dtype), segment], axis=1)
    dx = pts[:, 1:] - pts[:, :-1]          # (B, m, d) increments
    xprev = pts[:, :-1]                    # (B, m, d) left endpoints
    level1 = pts[:, -1]                    # (B, d)
    cross = jnp.einsum("bki,bkj->bij", xprev, dx)
    area = 0.5 * (cross - jnp.swapaxes(cross, 1, 2))
    iu, ju = np.triu_indices(d, k=1)
    level2 = area[:, iu, ju]               # (B, d*(d-1)/2)
    return jnp.concatenate([level1, level2], axis=-1)


def compute_multilevel_logsignature(path, time_brownian, time_u, time_t, depth):
    assert depth == 2, "only depth=2 log-signatures implemented"
    u_indices = np.searchsorted(time_brownian, time_u, side="right") - 1
    t_indices = np.searchsorted(time_brownian, time_t[1:], side="right") - 1
    u_idx_for_t = np.searchsorted(time_u, time_t[1:], side="right") - 1
    u_logsigrnn, logsigs, last_u_idx = [], [], -1
    for idx_t, idx_u in zip(t_indices, u_idx_for_t):
        idx_u = max(int(idx_u), 0)
        if idx_u != last_u_idx:
            u_logsigrnn.append(float(time_u[idx_u]))
            last_u_idx = idx_u
        seg = path[:, int(u_indices[idx_u]): int(idx_t) + 1]
        logsigs.append(depth2_logsig(seg))
    return [jnp.zeros_like(logsigs[0])] + logsigs, u_logsigrnn


def build_update_mask(time_t, u_logsigrnn):
    # replicate: if t >= u_logsigrnn[0]: del u_logsigrnn[0]; last_h = h
    u_list = list(u_logsigrnn) + [float(time_t[-1])]
    mask = np.zeros(len(time_t), dtype=np.int32)
    for idx, t in enumerate(time_t):
        if len(u_list) > 0 and t >= u_list[0]:
            del u_list[0]
            mask[idx] = 1
    return mask


# ----------------------------------------------------------------------------
# Pallas kernel: whole-window RNN in a single invocation.
#   rnn = FeedForwardNN(H+L -> H, hidden [H, H]) + Tanh
#   x_t = linear(h)  (no bias)
# concat([last_h, logsig]) @ W1 is split into last_h @ W1h + logsig @ W1l.
# ----------------------------------------------------------------------------
def _make_rnn_window_kernel(W, B, H, mask):
    mask = tuple(bool(int(m)) for m in np.asarray(mask))
    assert len(mask) == W

    def kernel(logsig_ref,                 # (W*B, L) step-major
               w1h_ref, w1l_ref, b1_ref,   # (H,H), (L,H), (1,H)
               w2_ref, b2_ref,             # (H,H), (1,H)
               w3_ref, b3_ref,             # (H,H), (1,H)
               wl_ref,                     # (H,H)
               out_ref):                   # out (W*B, H) step-major, dense slab
        f32 = jnp.float32

        # Batched log-signature projection for the whole window: one MXU matmul.
        zl = (jnp.dot(logsig_ref[...], w1l_ref[...], preferred_element_type=f32)
              + b1_ref[...])                                   # (W*B, H)

        # Hoist loop-invariant loads / broadcasts out of the recurrence.
        w1h = w1h_ref[...]
        w2 = w2_ref[...]
        w3 = w3_ref[...]
        b2 = jnp.broadcast_to(b2_ref[...], (B, H))
        b3 = jnp.broadcast_to(b3_ref[...], (B, H))

        # Fully-unrolled recurrence.  `rec` == last_h @ W1h; last_h only changes
        # at (static) mask boundaries, so the dot is recomputed only there.
        rec = jnp.zeros((B, H), f32)       # h0 = zeros (init_fixed=True)
        hs = []
        for w in range(W):
            z1 = rec + zl[w * B:(w + 1) * B]
            h1 = jnp.maximum(z1, 0.0)
            h2 = jnp.maximum(jnp.dot(h1, w2, preferred_element_type=f32) + b2, 0.0)
            h = jnp.tanh(jnp.dot(h2, w3, preferred_element_type=f32) + b3)
            hs.append(h)
            if mask[w] and w + 1 < W:
                rec = jnp.dot(h, w1h, preferred_element_type=f32)

        # Hoisted output linear: one (W*B, H) @ (H, H) matmul, one dense store.
        h_all = jnp.concatenate(hs, axis=0)                    # (W*B, H)
        out_ref[...] = jnp.dot(h_all, wl_ref[...], preferred_element_type=f32)

    return kernel


def run_rnn_pallas(logsig_stack, mask, params):
    W, B, L = logsig_stack.shape
    H = params["w1h"].shape[0]
    kernel = _make_rnn_window_kernel(W, B, H, mask)
    vmem = pl.BlockSpec(memory_space=pltpu.MemorySpace.VMEM)
    out2d = pl.pallas_call(
        kernel,
        out_shape=jax.ShapeDtypeStruct((W * B, H), jnp.float32),
        in_specs=[vmem] * 9,
        out_specs=vmem,
    )(logsig_stack.reshape(W * B, L),
      params["w1h"], params["w1l"], params["b1"],
      params["w2"], params["b2"],
      params["w3"], params["b3"],
      params["wl"])
    # ~2 KB layout fix-up kept outside the kernel (fuses with consumers).
    # TODO(synk): at production B/H, pad H to a multiple of 128, use bf16 weights
    #             (v6e MXU / v7x 64 MiB VMEM) and split batch across v7x's 2 TCs.
    return out2d.reshape(W, B, H).transpose(1, 0, 2)           # (B, W, H)


def rnn_reference(logsig_stack, mask, params):
    W, B, L = logsig_stack.shape
    H = params["w1h"].shape[0]
    last_h = jnp.zeros((B, H), jnp.float32)
    outs = []
    for i in range(W):
        z1 = last_h @ params["w1h"] + logsig_stack[i] @ params["w1l"] + params["b1"]
        h1 = jnp.maximum(z1, 0.0)
        h2 = jnp.maximum(h1 @ params["w2"] + params["b2"], 0.0)
        h = jnp.tanh(h2 @ params["w3"] + params["b3"])
        outs.append(h @ params["wl"])
        if int(mask[i]) == 1:
            last_h = h
    return jnp.stack(outs, axis=1)


# ----------------------------------------------------------------------------
# Deterministic parameter init (kaiming_uniform fan_in / relu, as in init_weights;
# biases keep the PyTorch default Linear bias init, fan_in = in_features).
# ----------------------------------------------------------------------------
def kaiming_uniform(key, fan_in, fan_out):
    bound = np.sqrt(6.0 / fan_in)
    return jax.random.uniform(key, (fan_in, fan_out), jnp.float32, -bound, bound)


def default_bias(key, fan_in, fan_out):
    bound = 1.0 / np.sqrt(fan_in)
    return jax.random.uniform(key, (1, fan_out), jnp.float32, -bound, bound)


def init_params(key, hidden_dim, logsig_ch):
    H, L = hidden_dim, logsig_ch
    ks = jax.random.split(key, 8)
    w1 = kaiming_uniform(ks[0], H + L, H)
    return {
        "w1h": w1[:H],                       # acts on last_h (concat order: h first)
        "w1l": w1[H:],                       # acts on the log-signature features
        "b1": default_bias(ks[1], H + L, H),
        "w2": kaiming_uniform(ks[2], H, H),
        "b2": default_bias(ks[3], H, H),
        "w3": kaiming_uniform(ks[4], H, H),
        "b3": default_bias(ks[5], H, H),
        "wl": kaiming_uniform(ks[6], H, H),  # self.linear, bias=False
    }


# ----------------------------------------------------------------------------
# Full forward pass (LogSigRNNEncoder.forward), augmentations=None, init_fixed=True.
# ----------------------------------------------------------------------------
def logsig_rnn_encoder_forward(params, real_data, *, depth, window_size,
                               hidden_dim, len_interval_u):
    # TODO(synk): `apply_augmentations` not translated; run with augmentations=None.
    # TODO(synk): `initial_nn` is unused because init_fixed=True (h0 = zeros).
    time_brownian = np.linspace(0.0, 1.0, window_size, dtype=np.float32)
    time_u = time_brownian[::len_interval_u]
    time_t = np.linspace(0.0, 1.0, window_size, dtype=np.float32)

    y = real_data                                        # augmentations=None
    y_logsig, u_logsigrnn = compute_multilevel_logsignature(
        y, time_brownian, time_u, time_t, depth)
    logsig_stack = jnp.stack(y_logsig, axis=0)           # (window, B, logsig_ch)
    mask = build_update_mask(time_t, u_logsigrnn)        # static (window,) schedule

    x = run_rnn_pallas(logsig_stack, mask, params)       # (B, window, hidden)
    return x, logsig_stack, mask


if __name__ == "__main__":
    # Small deterministic configuration.
    batch_size = 2
    input_dim = 3
    depth = 2
    window_size = 8
    hidden_dim = 32
    len_interval_u = 2
    logsig_ch = input_dim + input_dim * (input_dim - 1) // 2   # depth-2 channels

    root = jax.random.PRNGKey(0)
    k_param, k_data = jax.random.split(root)
    params = init_params(k_param, hidden_dim, logsig_ch)

    # Deterministic "real data": a small random-walk path (B, window, input_dim).
    steps = jax.random.normal(k_data, (batch_size, window_size, input_dim), jnp.float32)
    real_data = jnp.cumsum(0.1 * steps, axis=1)

    x, logsig_stack, mask = logsig_rnn_encoder_forward(
        params, real_data,
        depth=depth, window_size=window_size,
        hidden_dim=hidden_dim, len_interval_u=len_interval_u)
    x = jax.block_until_ready(x)

    assert x.shape == (batch_size, window_size, hidden_dim)

    # Sanity check vs. a plain-JAX reference of the same RNN loop.
    x_ref = rnn_reference(logsig_stack, np.asarray(mask), params)
    np.testing.assert_allclose(np.asarray(x), np.asarray(x_ref), rtol=2e-3, atol=2e-3)

    print("KERNEL_OK")
</pallas_src>

<mosaic_0001>
module attributes {stable_mosaic.version = 11 : i64} {
  func.func @kernel(%arg0: memref<16x6xf32, #tpu.memory_space<vmem>>, %arg1: memref<32x32xf32, #tpu.memory_space<vmem>>, %arg2: memref<6x32xf32, #tpu.memory_space<vmem>>, %arg3: memref<1x32xf32, #tpu.memory_space<vmem>>, %arg4: memref<32x32xf32, #tpu.memory_space<vmem>>, %arg5: memref<1x32xf32, #tpu.memory_space<vmem>>, %arg6: memref<32x32xf32, #tpu.memory_space<vmem>>, %arg7: memref<1x32xf32, #tpu.memory_space<vmem>>, %arg8: memref<32x32xf32, #tpu.memory_space<vmem>>, %arg9: memref<16x32xf32, #tpu.memory_space<vmem>>) attributes {dimension_semantics = [], scalar_prefetch = 0 : i64, scratch_operands = 0 : i64, tpu.core_type = #tpu.core_type<tc>} {
    %c0 = arith.constant 0 : index
    %c0_0 = arith.constant 0 : index
    %0 = vector.load %arg0[%c0, %c0_0] : memref<16x6xf32, #tpu.memory_space<vmem>>, vector<16x6xf32>
    %c0_1 = arith.constant 0 : index
    %c0_2 = arith.constant 0 : index
    %1 = vector.load %arg2[%c0_1, %c0_2] : memref<6x32xf32, #tpu.memory_space<vmem>>, vector<6x32xf32>
    %cst = arith.constant dense<0.000000e+00> : vector<16x32xf32>
    %2 = tpu.matmul %0, %1, %cst {dimension_numbers = #tpu.dot_dimension_numbers<[1], [0], [0], [1], [0, 0, 1, 1], [], []>} : vector<16x6xf32>, vector<6x32xf32>, vector<16x32xf32> -> vector<16x32xf32>
    %c0_3 = arith.constant 0 : index
    %c0_4 = arith.constant 0 : index
    %3 = vector.load %arg3[%c0_3, %c0_4] : memref<1x32xf32, #tpu.memory_space<vmem>>, vector<1x32xf32>
    %4 = vector.broadcast %3 : vector<1x32xf32> to vector<16x32xf32>
    %5 = arith.addf %2, %4 : vector<16x32xf32>
    %c0_5 = arith.constant 0 : index
    %c0_6 = arith.constant 0 : index
    %6 = vector.load %arg1[%c0_5, %c0_6] : memref<32x32xf32, #tpu.memory_space<vmem>>, vector<32x32xf32>
    %c0_7 = arith.constant 0 : index
    %c0_8 = arith.constant 0 : index
    %7 = vector.load %arg4[%c0_7, %c0_8] : memref<32x32xf32, #tpu.memory_space<vmem>>, vector<32x32xf32>
    %c0_9 = arith.constant 0 : index
    %c0_10 = arith.constant 0 : index
    %8 = vector.load %arg6[%c0_9, %c0_10] : memref<32x32xf32, #tpu.memory_space<vmem>>, vector<32x32xf32>
    %c0_11 = arith.constant 0 : index
    %c0_12 = arith.constant 0 : index
    %9 = vector.load %arg5[%c0_11, %c0_12] : memref<1x32xf32, #tpu.memory_space<vmem>>, vector<1x32xf32>
    %10 = vector.shape_cast %9 : vector<1x32xf32> to vector<1x32xf32>
    %11 = vector.broadcast %10 : vector<1x32xf32> to vector<2x32xf32>
    %c0_13 = arith.constant 0 : index
    %c0_14 = arith.constant 0 : index
    %12 = vector.load %arg7[%c0_13, %c0_14] : memref<1x32xf32, #tpu.memory_space<vmem>>, vector<1x32xf32>
    %13 = vector.shape_cast %12 : vector<1x32xf32> to vector<1x32xf32>
    %14 = vector.broadcast %13 : vector<1x32xf32> to vector<2x32xf32>
    %cst_15 = arith.constant 0.000000e+00 : f32
    %15 = vector.broadcast %cst_15 : f32 to vector<2x32xf32>
    %16 = vector.extract_strided_slice %5 {offsets = [0, 0], sizes = [2, 32], strides = [1, 1]} : vector<16x32xf32> to vector<2x32xf32>
    %17 = arith.addf %15, %16 : vector<2x32xf32>
    %cst_16 = arith.constant 0.000000e+00 : f32
    %18 = vector.broadcast %cst_16 : f32 to vector<2x32xf32>
    %19 = arith.maximumf %17, %18 : vector<2x32xf32>
    %cst_17 = arith.constant dense<0.000000e+00> : vector<2x32xf32>
    %20 = tpu.matmul %19, %7, %cst_17 {dimension_numbers = #tpu.dot_dimension_numbers<[1], [0], [0], [1], [0, 0, 1, 1], [], []>} : vector<2x32xf32>, vector<32x32xf32>, vector<2x32xf32> -> vector<2x32xf32>
    %21 = arith.addf %20, %11 : vector<2x32xf32>
    %cst_18 = arith.constant 0.000000e+00 : f32
    %22 = vector.broadcast %cst_18 : f32 to vector<2x32xf32>
    %23 = arith.maximumf %21, %22 : vector<2x32xf32>
    %cst_19 = arith.constant dense<0.000000e+00> : vector<2x32xf32>
    %24 = tpu.matmul %23, %8, %cst_19 {dimension_numbers = #tpu.dot_dimension_numbers<[1], [0], [0], [1], [0, 0, 1, 1], [], []>} : vector<2x32xf32>, vector<32x32xf32>, vector<2x32xf32> -> vector<2x32xf32>
    %25 = arith.addf %24, %14 : vector<2x32xf32>
    %26 = math.tanh %25 : vector<2x32xf32>
    %cst_20 = arith.constant dense<0.000000e+00> : vector<2x32xf32>
    %27 = tpu.matmul %26, %6, %cst_20 {dimension_numbers = #tpu.dot_dimension_numbers<[1], [0], [0], [1], [0, 0, 1, 1], [], []>} : vector<2x32xf32>, vector<32x32xf32>, vector<2x32xf32> -> vector<2x32xf32>
    %28 = vector.extract_strided_slice %5 {offsets = [2, 0], sizes = [2, 32], strides = [1, 1]} : vector<16x32xf32> to vector<2x32xf32>
    %29 = arith.addf %27, %28 : vector<2x32xf32>
    %cst_21 = arith.constant 0.000000e+00 : f32
    %30 = vector.broadcast %cst_21 : f32 to vector<2x32xf32>
    %31 = arith.maximumf %29, %30 : vector<2x32xf32>
    %cst_22 = arith.constant dense<0.000000e+00> : vector<2x32xf32>
    %32 = tpu.matmul %31, %7, %cst_22 {dimension_numbers = #tpu.dot_dimension_numbers<[1], [0], [0], [1], [0, 0, 1, 1], [], []>} : vector<2x32xf32>, vector<32x32xf32>, vector<2x32xf32> -> vector<2x32xf32>
    %33 = arith.addf %32, %11 : vector<2x32xf32>
    %cst_23 = arith.constant 0.000000e+00 : f32
    %34 = vector.broadcast %cst_23 : f32 to vector<2x32xf32>
    %35 = arith.maximumf %33, %34 : vector<2x32xf32>
    %cst_24 = arith.constant dense<0.000000e+00> : vector<2x32xf32>
    %36 = tpu.matmul %35, %8, %cst_24 {dimension_numbers = #tpu.dot_dimension_numbers<[1], [0], [0], [1], [0, 0, 1, 1], [], []>} : vector<2x32xf32>, vector<32x32xf32>, vector<2x32xf32> -> vector<2x32xf32>
    %37 = arith.addf %36, %14 : vector<2x32xf32>
    %38 = math.tanh %37 : vector<2x32xf32>
    %39 = vector.extract_strided_slice %5 {offsets = [4, 0], sizes = [2, 32], strides = [1, 1]} : vector<16x32xf32> to vector<2x32xf32>
    %40 = arith.addf %27, %39 : vector<2x32xf32>
    %cst_25 = arith.constant 0.000000e+00 : f32
    %41 = vector.broadcast %cst_25 : f32 to vector<2x32xf32>
    %42 = arith.maximumf %40, %41 : vector<2x32xf32>
    %cst_26 = arith.constant dense<0.000000e+00> : vector<2x32xf32>
    %43 = tpu.matmul %42, %7, %cst_26 {dimension_numbers = #tpu.dot_dimension_numbers<[1], [0], [0], [1], [0, 0, 1, 1], [], []>} : vector<2x32xf32>, vector<32x32xf32>, vector<2x32xf32> -> vector<2x32xf32>
    %44 = arith.addf %43, %11 : vector<2x32xf32>
    %cst_27 = arith.constant 0.000000e+00 : f32
    %45 = vector.broadcast %cst_27 : f32 to vector<2x32xf32>
    %46 = arith.maximumf %44, %45 : vector<2x32xf32>
    %cst_28 = arith.constant dense<0.000000e+00> : vector<2x32xf32>
    %47 = tpu.matmul %46, %8, %cst_28 {dimension_numbers = #tpu.dot_dimension_numbers<[1], [0], [0], [1], [0, 0, 1, 1], [], []>} : vector<2x32xf32>, vector<32x32xf32>, vector<2x32xf32> -> vector<2x32xf32>
    %48 = arith.addf %47, %14 : vector<2x32xf32>
    %49 = math.tanh %48 : vector<2x32xf32>
    %cst_29 = arith.constant dense<0.000000e+00> : vector<2x32xf32>
    %50 = tpu.matmul %49, %6, %cst_29 {dimension_numbers = #tpu.dot_dimension_numbers<[1], [0], [0], [1], [0, 0, 1, 1], [], []>} : vector<2x32xf32>, vector<32x32xf32>, vector<2x32xf32> -> vector<2x32xf32>
    %51 = vector.extract_strided_slice %5 {offsets = [6, 0], sizes = [2, 32], strides = [1, 1]} : vector<16x32xf32> to vector<2x32xf32>
    %52 = arith.addf %50, %51 : vector<2x32xf32>
    %cst_30 = arith.constant 0.000000e+00 : f32
    %53 = vector.broadcast %cst_30 : f32 to vector<2x32xf32>
    %54 = arith.maximumf %52, %53 : vector<2x32xf32>
    %cst_31 = arith.constant dense<0.000000e+00> : vector<2x32xf32>
    %55 = tpu.matmul %54, %7, %cst_31 {dimension_numbers = #tpu.dot_dimension_numbers<[1], [0], [0], [1], [0, 0, 1, 1], [], []>} : vector<2x32xf32>, vector<32x32xf32>, vector<2x32xf32> -> vector<2x32xf32>
    %56 = arith.addf %55, %11 : vector<2x32xf32>
    %cst_32 = arith.constant 0.000000e+00 : f32
    %57 = vector.broadcast %cst_32 : f32 to vector<2x32xf32>
    %58 = arith.maximumf %56, %57 : vector<2x32xf32>
    %cst_33 = arith.constant dense<0.000000e+00> : vector<2x32xf32>
    %59 = tpu.matmul %58, %8, %cst_33 {dimension_numbers = #tpu.dot_dimension_numbers<[1], [0], [0], [1], [0, 0, 1, 1], [], []>} : vector<2x32xf32>, vector<32x32xf32>, vector<2x32xf32> -> vector<2x32xf32>
    %60 = arith.addf %59, %14 : vector<2x32xf32>
    %61 = math.tanh %60 : vector<2x32xf32>
    %62 = vector.extract_strided_slice %5 {offsets = [8, 0], sizes = [2, 32], strides = [1, 1]} : vector<16x32xf32> to vector<2x32xf32>
    %63 = arith.addf %50, %62 : vector<2x32xf32>
    %cst_34 = arith.constant 0.000000e+00 : f32
    %64 = vector.broadcast %cst_34 : f32 to vector<2x32xf32>
    %65 = arith.maximumf %63, %64 : vector<2x32xf32>
    %cst_35 = arith.constant dense<0.000000e+00> : vector<2x32xf32>
    %66 = tpu.matmul %65, %7, %cst_35 {dimension_numbers = #tpu.dot_dimension_numbers<[1], [0], [0], [1], [0, 0, 1, 1], [], []>} : vector<2x32xf32>, vector<32x32xf32>, vector<2x32xf32> -> vector<2x32xf32>
    %67 = arith.addf %66, %11 : vector<2x32xf32>
    %cst_36 = arith.constant 0.000000e+00 : f32
    %68 = vector.broadcast %cst_36 : f32 to vector<2x32xf32>
    %69 = arith.maximumf %67, %68 : vector<2x32xf32>
    %cst_37 = arith.constant dense<0.000000e+00> : vector<2x32xf32>
    %70 = tpu.matmul %69, %8, %cst_37 {dimension_numbers = #tpu.dot_dimension_numbers<[1], [0], [0], [1], [0, 0, 1, 1], [], []>} : vector<2x32xf32>, vector<32x32xf32>, vector<2x32xf32> -> vector<2x32xf32>
    %71 = arith.addf %70, %14 : vector<2x32xf32>
    %72 = math.tanh %71 : vector<2x32xf32>
    %cst_38 = arith.constant dense<0.000000e+00> : vector<2x32xf32>
    %73 = tpu.matmul %72, %6, %cst_38 {dimension_numbers = #tpu.dot_dimension_numbers<[1], [0], [0], [1], [0, 0, 1, 1], [], []>} : vector<2x32xf32>, vector<32x32xf32>, vector<2x32xf32> -> vector<2x32xf32>
    %74 = vector.extract_strided_slice %5 {offsets = [10, 0], sizes = [2, 32], strides = [1, 1]} : vector<16x32xf32> to vector<2x32xf32>
    %75 = arith.addf %73, %74 : vector<2x32xf32>
    %cst_39 = arith.constant 0.000000e+00 : f32
    %76 = vector.broadcast %cst_39 : f32 to vector<2x32xf32>
    %77 = arith.maximumf %75, %76 : vector<2x32xf32>
    %cst_40 = arith.constant dense<0.000000e+00> : vector<2x32xf32>
    %78 = tpu.matmul %77, %7, %cst_40 {dimension_numbers = #tpu.dot_dimension_numbers<[1], [0], [0], [1], [0, 0, 1, 1], [], []>} : vector<2x32xf32>, vector<32x32xf32>, vector<2x32xf32> -> vector<2x32xf32>
    %79 = arith.addf %78, %11 : vector<2x32xf32>
    %cst_41 = arith.constant 0.000000e+00 : f32
    %80 = vector.broadcast %cst_41 : f32 to vector<2x32xf32>
    %81 = arith.maximumf %79, %80 : vector<2x32xf32>
    %cst_42 = arith.constant dense<0.000000e+00> : vector<2x32xf32>
    %82 = tpu.matmul %81, %8, %cst_42 {dimension_numbers = #tpu.dot_dimension_numbers<[1], [0], [0], [1], [0, 0, 1, 1], [], []>} : vector<2x32xf32>, vector<32x32xf32>, vector<2x32xf32> -> vector<2x32xf32>
    %83 = arith.addf %82, %14 : vector<2x32xf32>
    %84 = math.tanh %83 : vector<2x32xf32>
    %85 = vector.extract_strided_slice %5 {offsets = [12, 0], sizes = [2, 32], strides = [1, 1]} : vector<16x32xf32> to vector<2x32xf32>
    %86 = arith.addf %73, %85 : vector<2x32xf32>
    %cst_43 = arith.constant 0.000000e+00 : f32
    %87 = vector.broadcast %cst_43 : f32 to vector<2x32xf32>
    %88 = arith.maximumf %86, %87 : vector<2x32xf32>
    %cst_44 = arith.constant dense<0.000000e+00> : vector<2x32xf32>
    %89 = tpu.matmul %88, %7, %cst_44 {dimension_numbers = #tpu.dot_dimension_numbers<[1], [0], [0], [1], [0, 0, 1, 1], [], []>} : vector<2x32xf32>, vector<32x32xf32>, vector<2x32xf32> -> vector<2x32xf32>
    %90 = arith.addf %89, %11 : vector<2x32xf32>
    %cst_45 = arith.constant 0.000000e+00 : f32
    %91 = vector.broadcast %cst_45 : f32 to vector<2x32xf32>
    %92 = arith.maximumf %90, %91 : vector<2x32xf32>
    %cst_46 = arith.constant dense<0.000000e+00> : vector<2x32xf32>
    %93 = tpu.matmul %92, %8, %cst_46 {dimension_numbers = #tpu.dot_dimension_numbers<[1], [0], [0], [1], [0, 0, 1, 1], [], []>} : vector<2x32xf32>, vector<32x32xf32>, vector<2x32xf32> -> vector<2x32xf32>
    %94 = arith.addf %93, %14 : vector<2x32xf32>
    %95 = math.tanh %94 : vector<2x32xf32>
    %cst_47 = arith.constant dense<0.000000e+00> : vector<2x32xf32>
    %96 = tpu.matmul %95, %6, %cst_47 {dimension_numbers = #tpu.dot_dimension_numbers<[1], [0], [0], [1], [0, 0, 1, 1], [], []>} : vector<2x32xf32>, vector<32x32xf32>, vector<2x32xf32> -> vector<2x32xf32>
    %97 = vector.extract_strided_slice %5 {offsets = [14, 0], sizes = [2, 32], strides = [1, 1]} : vector<16x32xf32> to vector<2x32xf32>
    %98 = arith.addf %96, %97 : vector<2x32xf32>
    %cst_48 = arith.constant 0.000000e+00 : f32
    %99 = vector.broadcast %cst_48 : f32 to vector<2x32xf32>
    %100 = arith.maximumf %98, %99 : vector<2x32xf32>
    %cst_49 = arith.constant dense<0.000000e+00> : vector<2x32xf32>
    %101 = tpu.matmul %100, %7, %cst_49 {dimension_numbers = #tpu.dot_dimension_numbers<[1], [0], [0], [1], [0, 0, 1, 1], [], []>} : vector<2x32xf32>, vector<32x32xf32>, vector<2x32xf32> -> vector<2x32xf32>
    %102 = arith.addf %101, %11 : vector<2x32xf32>
    %cst_50 = arith.constant 0.000000e+00 : f32
    %103 = vector.broadcast %cst_50 : f32 to vector<2x32xf32>
    %104 = arith.maximumf %102, %103 : vector<2x32xf32>
    %cst_51 = arith.constant dense<0.000000e+00> : vector<2x32xf32>
    %105 = tpu.matmul %104, %8, %cst_51 {dimension_numbers = #tpu.dot_dimension_numbers<[1], [0], [0], [1], [0, 0, 1, 1], [], []>} : vector<2x32xf32>, vector<32x32xf32>, vector<2x32xf32> -> vector<2x32xf32>
    %106 = arith.addf %105, %14 : vector<2x32xf32>
    %107 = math.tanh %106 : vector<2x32xf32>
    %108 = tpu.concatenate %26, %38, %49, %61, %72, %84, %95, %107 in 0 : vector<2x32xf32>, vector<2x32xf32>, vector<2x32xf32>, vector<2x32xf32>, vector<2x32xf32>, vector<2x32xf32>, vector<2x32xf32>, vector<2x32xf32> -> vector<16x32xf32>
    %c0_52 = arith.constant 0 : index
    %c0_53 = arith.constant 0 : index
    %109 = vector.load %arg8[%c0_52, %c0_53] : memref<32x32xf32, #tpu.memory_space<vmem>>, vector<32x32xf32>
    %cst_54 = arith.constant dense<0.000000e+00> : vector<16x32xf32>
    %110 = tpu.matmul %108, %109, %cst_54 {dimension_numbers = #tpu.dot_dimension_numbers<[1], [0], [0], [1], [0, 0, 1, 1], [], []>} : vector<16x32xf32>, vector<32x32xf32>, vector<16x32xf32> -> vector<16x32xf32>
    %c0_55 = arith.constant 0 : index
    %c0_56 = arith.constant 0 : index
    %111 = vector.load %arg9[%c0_55, %c0_56] : memref<16x32xf32, #tpu.memory_space<vmem>>, vector<16x32xf32>
    tpu.vector_store %arg9[%c0_55, %c0_56], %110 {strides = array<i32>} : memref<16x32xf32, #tpu.memory_space<vmem>>, vector<16x32xf32>,
    return
  }
}

</mosaic_0001>

<llo_original>
// kernel: tpu_custom_call.1
$region0: #{tpu_custom_call.1}
  #allocation0 [shape = 'u32[]', space=smem, size = 0x4, offset = 0x4, fixed_abs, tag = 'smem constant byte address 0x4 - core index']
  #allocation1 [shape = 'u32[144,128]{1,0:T(1,128)}', space=vmem, size = 0x12000, scoped, tag = 'internal scratch']
  %s0 = inlined_call_operand.vmem [shape: f32[16,6], index: 0, kind: input, shape index: {}]
  %s1 = inlined_call_operand.hbm [shape: f32[32,32], index: 1, kind: input, shape index: {}]
  %s2 = inlined_call_operand.hbm [shape: f32[6,32], index: 2, kind: input, shape index: {}]
  %s3 = inlined_call_operand.vmem [shape: f32[1,32], index: 3, kind: input, shape index: {}]
  %s4 = inlined_call_operand.vmem [shape: f32[32,32], index: 4, kind: input, shape index: {}]
  %s5 = inlined_call_operand.vmem [shape: f32[1,32], index: 5, kind: input, shape index: {}]
  %s6 = inlined_call_operand.hbm [shape: f32[32,32], index: 6, kind: input, shape index: {}]
  %s7 = inlined_call_operand.vmem [shape: f32[1,32], index: 7, kind: input, shape index: {}]
  %s8 = inlined_call_operand.hbm [shape: f32[32,32], index: 8, kind: input, shape index: {}]
  %s9 = inlined_call_operand.hbm [shape: f32[16,32], index: 9, kind: output, shape index: {}]
  %s10 = sld [smem:[#allocation0]]
  $region62: #{tpu_custom_call.1} parent=0
    _
  %s12 = ssub.s32 1, %s10
  %s13 = scalar_select 0, %s12, %s10
  $region1: #{tpu_custom_call.1} parent=0
    #allocation2 [shape = 'u8[16384]{0}', space=vmem, size = 0x4000, scoped, tag = 'input window, operand 1, single buffered']
    #allocation3 [shape = 's32[1]{0}', space=sflag, size = 0x4, scoped, tag = 'scoped memory for tpu_custom_call.1']
    #allocation4 [shape = 's32[1]{0}', space=sflag, size = 0x4, scoped, tag = 'scoped memory for tpu_custom_call.1']
    #allocation5 [shape = 'u8[4096]{0}', space=vmem, size = 0x1000, scoped, tag = 'input window, operand 2, single buffered']
    #allocation6 [shape = 's32[1]{0}', space=sflag, size = 0x4, scoped, tag = 'scoped memory for tpu_custom_call.1']
    #allocation7 [shape = 'u8[16384]{0}', space=vmem, size = 0x4000, scoped, tag = 'input window, operand 6, single buffered']
    #allocation8 [shape = 'u8[16384]{0}', space=vmem, size = 0x4000, scoped, tag = 'input window, operand 8, single buffered']
    #allocation9 [shape = 's32[1]{0}', space=sflag, size = 0x4, scoped, tag = 'scoped memory for tpu_custom_call.1']
    #allocation10 [shape = 'u8[8192]{0}', space=vmem, size = 0x2000, scoped, tag = 'output window, operand 0, single buffered']
    %14 = vsyncpa [#allocation3], 0
    %15 = vsyncpa [#allocation6], 0
    %16 = vsyncpa [#allocation9], 0
    %17 = vsyncpa [#allocation4], 0
    // Predicated region
    $region2: #{tpu_custom_call.1} parent=1 // pred_check
      _
    $region3: #{tpu_custom_call.1} parent=1 // pred_check_branch
      %19 = sbr.rel (0) target = $region5
    $region4: #{tpu_custom_call.1} parent=1 // pred_region
      _
    $region5: #{tpu_custom_call.1} parent=1 // pred_fallthru
      _
    // Predicated region
    $region6: #{tpu_custom_call.1} parent=1 // pred_check
      _
    $region7: #{tpu_custom_call.1} parent=1 // pred_check_branch
      %21 = sbr.rel (0) target = $region9
    $region8: #{tpu_custom_call.1} parent=1 // pred_region
      %s23 = ssub.s32 512, 512
      %24 = vsyncadd [#allocation3], %s23
      %s25 = sshll.u32 [#allocation2], 4
      %s26 = int_to_ptr.vmem [resolvable:$true] %s25
      %31 = dma.hbm_to_vmem [thread:$0]  %s1, 512, %s26, [#allocation3], 128, 128, 8
    $region9: #{tpu_custom_call.1} parent=1 // pred_fallthru
      _
    // Predicated region
    $region10: #{tpu_custom_call.1} parent=1 // pred_check
      _
    $region11: #{tpu_custom_call.1} parent=1 // pred_check_branch
      %33 = sbr.rel (0) target = $region13
    $region12: #{tpu_custom_call.1} parent=1 // pred_region
      %s35 = ssub.s32 128, 128
      %36 = vsyncadd [#allocation6], %s35
      %s38 = sshll.u32 [#allocation5], 4
      %s39 = int_to_ptr.vmem [resolvable:$true] %s38
      %41 = dma.hbm_to_vmem [thread:$0]  %s2, 128, %s39, [#allocation6]
    $region13: #{tpu_custom_call.1} parent=1 // pred_fallthru
      _
    // Predicated region
    $region14: #{tpu_custom_call.1} parent=1 // pred_check
      _
    $region15: #{tpu_custom_call.1} parent=1 // pred_check_branch
      %43 = sbr.rel (0) target = $region17
    $region16: #{tpu_custom_call.1} parent=1 // pred_region
      _
    $region17: #{tpu_custom_call.1} parent=1 // pred_fallthru
      _
    // Predicated region
    $region18: #{tpu_custom_call.1} parent=1 // pred_check
      _
    $region19: #{tpu_custom_call.1} parent=1 // pred_check_branch
      %45 = sbr.rel (0) target = $region21
    $region20: #{tpu_custom_call.1} parent=1 // pred_region
      _
    $region21: #{tpu_custom_call.1} parent=1 // pred_fallthru
      _
    // Predicated region
    $region22: #{tpu_custom_call.1} parent=1 // pred_check
      _
    $region23: #{tpu_custom_call.1} parent=1 // pred_check_branch
      %47 = sbr.rel (0) target = $region25
    $region24: #{tpu_custom_call.1} parent=1 // pred_region
      _
    $region25: #{tpu_custom_call.1} parent=1 // pred_fallthru
      _
    // Predicated region
    $region26: #{tpu_custom_call.1} parent=1 // pred_check
      _
    $region27: #{tpu_custom_call.1} parent=1 // pred_check_branch
      %49 = sbr.rel (0) target = $region29
    $region28: #{tpu_custom_call.1} parent=1 // pred_region
      %s51 = ssub.s32 512, 512
      %52 = vsyncadd [#allocation6], %s51
      %s53 = sshll.u32 [#allocation7], 4
      %s54 = int_to_ptr.vmem [resolvable:$true] %s53
      %59 = dma.hbm_to_vmem [thread:$0]  %s6, 512, %s54, [#allocation6], 128, 128, 8
    $region29: #{tpu_custom_call.1} parent=1 // pred_fallthru
      _
    // Predicated region
    $region30: #{tpu_custom_call.1} parent=1 // pred_check
      _
    $region31: #{tpu_custom_call.1} parent=1 // pred_check_branch
      %61 = sbr.rel (0) target = $region33
    $region32: #{tpu_custom_call.1} parent=1 // pred_region
      _
    $region33: #{tpu_custom_call.1} parent=1 // pred_fallthru
      _
    // Predicated region
    $region34: #{tpu_custom_call.1} parent=1 // pred_check
      _
    $region35: #{tpu_custom_call.1} parent=1 // pred_check_branch
      %63 = sbr.rel (0) target = $region37
    $region36: #{tpu_custom_call.1} parent=1 // pred_region
      %s65 = ssub.s32 512, 512
      %66 = vsyncadd [#allocation9], %s65
      %s67 = sshll.u32 [#allocation8], 4
      %s68 = int_to_ptr.vmem [resolvable:$true] %s67
      %73 = dma.hbm_to_vmem [thread:$0]  %s8, 512, %s68, [#allocation9], 128, 128, 8
    $region37: #{tpu_custom_call.1} parent=1 // pred_fallthru
      _
    // Predicated region
    $region38: #{tpu_custom_call.1} parent=1 // pred_check
      _
    $region39: #{tpu_custom_call.1} parent=1 // pred_check_branch
      %75 = sbr.rel (0) target = $region41
    $region40: #{tpu_custom_call.1} parent=1 // pred_region
      %76 = dma.done [#allocation3], 512
    $region41: #{tpu_custom_call.1} parent=1 // pred_fallthru
      _
    // Predicated region
    $region42: #{tpu_custom_call.1} parent=1 // pred_check
      _
    $region43: #{tpu_custom_call.1} parent=1 // pred_check_branch
      %78 = sbr.rel (0) target = $region45
    $region44: #{tpu_custom_call.1} parent=1 // pred_region
      %79 = dma.done [#allocation6], 128
    $region45: #{tpu_custom_call.1} parent=1 // pred_fallthru
      _
    // Predicated region
    $region46: #{tpu_custom_call.1} parent=1 // pred_check
      _
    $region47: #{tpu_custom_call.1} parent=1 // pred_check_branch
      %81 = sbr.rel (0) target = $region49
    $region48: #{tpu_custom_call.1} parent=1 // pred_region
      %82 = dma.done [#allocation6], 512
    $region49: #{tpu_custom_call.1} parent=1 // pred_fallthru
      _
    // Predicated region
    $region50: #{tpu_custom_call.1} parent=1 // pred_check
      _
    $region51: #{tpu_custom_call.1} parent=1 // pred_check_branch
      %84 = sbr.rel (0) target = $region53
    $region52: #{tpu_custom_call.1} parent=1 // pred_region
      %85 = dma.done [#allocation9], 512
    $region53: #{tpu_custom_call.1} parent=1 // pred_fallthru
      _
    %v86 = vld [vmem:[%s0] sm:$0xff]
    %v87 = vld [vmem:[%s0 + $0x8] sm:$0xff]
    %v88 = vld [vmem:[#allocation5] sm:$0x3f]
    %v89 = vld [vmem:[%s3] sm:$0x1]
    %v91 = vlaneseq
    %v92 = vshrl.u32 %v91, 7
    %v93 = vsub.s32 0, %v92
    %v94 = vrot.slane %v89, %v93
    %vm96 = vcmask 48128
    %v98 = vsel %vm96, %v86, 0
    %v101 = vsel %vm96, %v87, 0
    %vm103 = vcmask 1045504
    %v105 = vsel %vm103, %v88, 0
    %107 = vmatprep.subr.mxu0 0.0
    %108 = vmatpush1.msra.mxu0 %v105
    %109 = vmatprep.subr.mxu0 0.0
    %110 = vmatpush1.msra.mxu0 0.0
    %111 = vmatprep.subr.mxu0 0.0
    %112 = vmatpush1.msra.mxu0 0.0
    %113 = vmatprep.subr.mxu0 0.0
    %114 = vmatpush1.msra.mxu0 0.0
    %115 = vmatprep.subr.mxu0 0.0
    %116 = vmatpush1.msra.mxu0 0.0
    %117 = vmatprep.subr.mxu0 0.0
    %118 = vmatpush1.msra.mxu0 0.0
    %119 = vmatprep.subr.mxu0 0.0
    %120 = vmatpush1.msra.mxu0 0.0
    %121 = vmatprep.subr.mxu0 0.0
    %122 = vmatpush1.msra.mxu0 0.0
    %123 = vmatprep.subr.mxu0 0.0
    %124 = vmatpush1.msra.mxu0 0.0
    %125 = vmatprep.subr.mxu0 0.0
    %126 = vmatpush1.msra.mxu0 0.0
    %127 = vmatprep.subr.mxu0 0.0
    %128 = vmatpush1.msra.mxu0 0.0
    %129 = vmatprep.subr.mxu0 0.0
    %130 = vmatpush1.msra.mxu0 0.0
    %131 = vmatprep.subr.mxu0 0.0
    %132 = vmatpush1.msra.mxu0 0.0
    %133 = vmatprep.subr.mxu0 0.0
    %134 = vmatpush1.msra.mxu0 0.0
    %135 = vmatprep.subr.mxu0 0.0
    %136 = vmatpush1.msra.mxu0 0.0
    %137 = vmatprep.subr.mxu0 0.0
    %138 = vmatpush1.msra.mxu0 0.0
    %139 = vmatprep.subr.mxu0 0.0
    %140 = vmatpush1.msra.mxu0 0.0
    %141 = vmatprep.subr.mxu0 0.0
    %142 = vmatpush1.msra.mxu0 0.0
    %143 = vmatprep.subr.mxu0 0.0
    %144 = vmatpush1.msra.mxu0 0.0
    %145 = vmatprep.subr.mxu0 0.0
    %146 = vmatpush1.msra.mxu0 0.0
    %147 = vmatprep.subr.mxu0 0.0
    %148 = vmatpush1.msra.mxu0 0.0
    %149 = vmatprep.subr.mxu0 0.0
    %150 = vmatpush1.msra.mxu0 0.0
    %151 = vmatprep.subr.mxu0 0.0
    %152 = vmatpush1.msra.mxu0 0.0
    %153 = vmatprep.subr.mxu0 0.0
    %154 = vmatpush1.msra.mxu0 0.0
    %155 = vmatprep.subr.mxu0 0.0
    %156 = vmatpush1.msra.mxu0 0.0
    %157 = vmatprep.subr.mxu0 0.0
    %158 = vmatpush1.msra.mxu0 0.0
    %159 = vmatprep.subr.mxu0 0.0
    %160 = vmatpush1.msra.mxu0 0.0
    %161 = vmatprep.subr.mxu0 0.0
    %162 = vmatpush1.msra.mxu0 0.0
    %163 = vmatprep.subr.mxu0 0.0
    %164 = vmatpush1.msra.mxu0 0.0
    %165 = vmatprep.subr.mxu0 0.0
    %166 = vmatpush1.msra.mxu0 0.0
    %167 = vmatprep.subr.mxu0 0.0
    %168 = vmatpush1.msra.mxu0 0.0
    %169 = vmatprep.subr.mxu0 0.0
    %170 = vmatpush1.msra.mxu0 0.0
    %171 = vmatprep.mubr.f32.mxu0 0.0
    %172 = vmatmul.mubr.f32.gmra.mrb[0].mxu0 %v98
    %v173 = vpop.f32.mrb[0].mxu0
    %v174 = vadd.f32 %v94, %v173
    %v175 = vpop.f32.mrb[0].mxu0
    %176 = vmatprep.mubr.f32.mxu0 0.0
    %177 = vmatmul.mubr.f32.gmra.mrb[0].mxu0 %v101
    %v178 = vpop.f32.mrb[0].mxu0
    %v179 = vadd.f32 %v94, %v178
    %v180 = vpop.f32.mrb[0].mxu0
    %181 = vdwg.mxu0
    %v182 = vld [vmem:[#allocation2] sm:$0xff]
    %v183 = vld [vmem:[#allocation2 + $0x8] sm:$0xff]
    %v184 = vld [vmem:[#allocation2 + $0x10] sm:$0xff]
    %v185 = vld [vmem:[#allocation2 + $0x18] sm:$0xff]
    %v186 = vld [vmem:[%s4] sm:$0xff]
    %v187 = vld [vmem:[%s4 + $0x8] sm:$0xff]
    %v188 = vld [vmem:[%s4 + $0x10] sm:$0xff]
    %v189 = vld [vmem:[%s4 + $0x18] sm:$0xff]
    %v190 = vld [vmem:[#allocation7] sm:$0xff]
    %v191 = vld [vmem:[#allocation7 + $0x8] sm:$0xff]
    %v192 = vld [vmem:[#allocation7 + $0x10] sm:$0xff]
    %v193 = vld [vmem:[#allocation7 + $0x18] sm:$0xff]
    %v194 = vld [vmem:[%s5] sm:$0x1]
    %v196 = vlaneseq
    %v197 = vshrl.u32 %v196, 7
    %v198 = vsub.s32 0, %v197
    %v199 = vrot.slane %v194, %v198
    %v201 = vld [vmem:[%s7] sm:$0x1]
    %v203 = vlaneseq
    %v204 = vshrl.u32 %v203, 7
    %v205 = vsub.s32 0, %v204
    %v206 = vrot.slane %v201, %v205
    %v208 = vadd.f32 %v174, 0.0
    %v209 = vmax.f32 %v208, 0.0
    %vm210 = vcmask 261120
    %v212 = vsel %vm210, %v209, 0
    %214 = vmatprep.subr.mxu0 0.0
    %215 = vmatpush1.msra.mxu0 %v186
    %216 = vmatprep.subr.mxu0 0.0
    %217 = vmatpush1.msra.mxu0 %v187
    %218 = vmatprep.subr.mxu0 0.0
    %219 = vmatpush1.msra.mxu0 %v188
    %220 = vmatprep.subr.mxu0 0.0
    %221 = vmatpush1.msra.mxu0 %v189
    %222 = vmatprep.subr.mxu0 0.0
    %223 = vmatpush1.msra.mxu0 0.0
    %224 = vmatprep.subr.mxu0 0.0
    %225 = vmatpush1.msra.mxu0 0.0
    %226 = vmatprep.subr.mxu0 0.0
    %227 = vmatpush1.msra.mxu0 0.0
    %228 = vmatprep.subr.mxu0 0.0
    %229 = vmatpush1.msra.mxu0 0.0
    %230 = vmatprep.subr.mxu0 0.0
    %231 = vmatpush1.msra.mxu0 0.0
    %232 = vmatprep.subr.mxu0 0.0
    %233 = vmatpush1.msra.mxu0 0.0
    %234 = vmatprep.subr.mxu0 0.0
    %235 = vmatpush1.msra.mxu0 0.0
    %236 = vmatprep.subr.mxu0 0.0
    %237 = vmatpush1.msra.mxu0 0.0
    %238 = vmatprep.subr.mxu0 0.0
    %239 = vmatpush1.msra.mxu0 0.0
    %240 = vmatprep.subr.mxu0 0.0
    %241 = vmatpush1.msra.mxu0 0.0
    %242 = vmatprep.subr.mxu0 0.0
    %243 = vmatpush1.msra.mxu0 0.0
    %244 = vmatprep.subr.mxu0 0.0
    %245 = vmatpush1.msra.mxu0 0.0
    %246 = vmatprep.subr.mxu0 0.0
    %247 = vmatpush1.msra.mxu0 0.0
    %248 = vmatprep.subr.mxu0 0.0
    %249 = vmatpush1.msra.mxu0 0.0
    %250 = vmatprep.subr.mxu0 0.0
    %251 = vmatpush1.msra.mxu0 0.0
    %252 = vmatprep.subr.mxu0 0.0
    %253 = vmatpush1.msra.mxu0 0.0
    %254 = vmatprep.subr.mxu0 0.0
    %255 = vmatpush1.msra.mxu0 0.0
    %256 = vmatprep.subr.mxu0 0.0
    %257 = vmatpush1.msra.mxu0 0.0
    %258 = vmatprep.subr.mxu0 0.0
    %259 = vmatpush1.msra.mxu0 0.0
    %260 = vmatprep.subr.mxu0 0.0
    %261 = vmatpush1.msra.mxu0 0.0
    %262 = vmatprep.subr.mxu0 0.0
    %263 = vmatpush1.msra.mxu0 0.0
    %264 = vmatprep.subr.mxu0 0.0
    %265 = vmatpush1.msra.mxu0 0.0
    %266 = vmatprep.subr.mxu0 0.0
    %267 = vmatpush1.msra.mxu0 0.0
    %268 = vmatprep.subr.mxu0 0.0
    %269 = vmatpush1.msra.mxu0 0.0
    %270 = vmatprep.subr.mxu0 0.0
    %271 = vmatpush1.msra.mxu0 0.0
    %272 = vmatprep.subr.mxu0 0.0
    %273 = vmatpush1.msra.mxu0 0.0
    %274 = vmatprep.subr.mxu0 0.0
    %275 = vmatpush1.msra.mxu0 0.0
    %276 = vmatprep.subr.mxu0 0.0
    %277 = vmatpush1.msra.mxu0 0.0
    %278 = vmatprep.mubr.f32.mxu0 0.0
    %279 = vmatmul.mubr.f32.gmra.mrb[0].mxu0 %v212
    %v280 = vpop.f32.mrb[0].mxu0
    %v281 = vadd.f32 %v199, %v280
    %v282 = vpop.f32.mrb[0].mxu0
    %283 = vdwg.mxu0
    %v284 = vmax.f32 %v281, 0.0
    %v286 = vsel %vm210, %v284, 0
    %288 = vmatprep.subr.mxu0 0.0
    %289 = vmatpush1.msra.mxu0 %v190
    %290 = vmatprep.subr.mxu0 0.0
    %291 = vmatpush1.msra.mxu0 %v191
    %292 = vmatprep.subr.mxu0 0.0
    %293 = vmatpush1.msra.mxu0 %v192
    %294 = vmatprep.subr.mxu0 0.0
    %295 = vmatpush1.msra.mxu0 %v193
    %296 = vmatprep.subr.mxu0 0.0
    %297 = vmatpush1.msra.mxu0 0.0
    %298 = vmatprep.subr.mxu0 0.0
    %299 = vmatpush1.msra.mxu0 0.0
    %300 = vmatprep.subr.mxu0 0.0
    %301 = vmatpush1.msra.mxu0 0.0
    %302 = vmatprep.subr.mxu0 0.0
    %303 = vmatpush1.msra.mxu0 0.0
    %304 = vmatprep.subr.mxu0 0.0
    %305 = vmatpush1.msra.mxu0 0.0
    %306 = vmatprep.subr.mxu0 0.0
    %307 = vmatpush1.msra.mxu0 0.0
    %308 = vmatprep.subr.mxu0 0.0
    %309 = vmatpush1.msra.mxu0 0.0
    %310 = vmatprep.subr.mxu0 0.0
    %311 = vmatpush1.msra.mxu0 0.0
    %312 = vmatprep.subr.mxu0 0.0
    %313 = vmatpush1.msra.mxu0 0.0
    %314 = vmatprep.subr.mxu0 0.0
    %315 = vmatpush1.msra.mxu0 0.0
    %316 = vmatprep.subr.mxu0 0.0
    %317 = vmatpush1.msra.mxu0 0.0
    %318 = vmatprep.subr.mxu0 0.0
    %319 = vmatpush1.msra.mxu0 0.0
    %320 = vmatprep.subr.mxu0 0.0
    %321 = vmatpush1.msra.mxu0 0.0
    %322 = vmatprep.subr.mxu0 0.0
    %323 = vmatpush1.msra.mxu0 0.0
    %324 = vmatprep.subr.mxu0 0.0
    %325 = vmatpush1.msra.mxu0 0.0
    %326 = vmatprep.subr.mxu0 0.0
    %327 = vmatpush1.msra.mxu0 0.0
    %328 = vmatprep.subr.mxu0 0.0
    %329 = vmatpush1.msra.mxu0 0.0
    %330 = vmatprep.subr.mxu0 0.0
    %331 = vmatpush1.msra.mxu0 0.0
    %332 = vmatprep.subr.mxu0 0.0
    %333 = vmatpush1.msra.mxu0 0.0
    %334 = vmatprep.subr.mxu0 0.0
    %335 = vmatpush1.msra.mxu0 0.0
    %336 = vmatprep.subr.mxu0 0.0
    %337 = vmatpush1.msra.mxu0 0.0
    %338 = vmatprep.subr.mxu0 0.0
    %339 = vmatpush1.msra.mxu0 0.0
    %340 = vmatprep.subr.mxu0 0.0
    %341 = vmatpush1.msra.mxu0 0.0
    %342 = vmatprep.subr.mxu0 0.0
    %343 = vmatpush1.msra.mxu0 0.0
    %344 = vmatprep.subr.mxu0 0.0
    %345 = vmatpush1.msra.mxu0 0.0
    %346 = vmatprep.subr.mxu0 0.0
    %347 = vmatpush1.msra.mxu0 0.0
    %348 = vmatprep.subr.mxu0 0.0
    %349 = vmatpush1.msra.mxu0 0.0
    %350 = vmatprep.subr.mxu0 0.0
    %351 = vmatpush1.msra.mxu0 0.0
    %352 = vmatprep.mubr.f32.mxu0 0.0
    %353 = vmatmul.mubr.f32.gmra.mrb[0].mxu0 %v286
    %v354 = vpop.f32.mrb[0].mxu0
    %v355 = vadd.f32 %v206, %v354
    %v356 = vpop.f32.mrb[0].mxu0
    %357 = vdwg.mxu0
    %v358 = vtanh.pop %v355
    %v360 = vsel %vm210, %v358, 0
    %362 = vmatprep.subr.mxu0 0.0
    %363 = vmatpush1.msra.mxu0 %v182
    %364 = vmatprep.subr.mxu0 0.0
    %365 = vmatpush1.msra.mxu0 %v183
    %366 = vmatprep.subr.mxu0 0.0
    %367 = vmatpush1.msra.mxu0 %v184
    %368 = vmatprep.subr.mxu0 0.0
    %369 = vmatpush1.msra.mxu0 %v185
    %370 = vmatprep.subr.mxu0 0.0
    %371 = vmatpush1.msra.mxu0 0.0
    %372 = vmatprep.subr.mxu0 0.0
    %373 = vmatpush1.msra.mxu0 0.0
    %374 = vmatprep.subr.mxu0 0.0
    %375 = vmatpush1.msra.mxu0 0.0
    %376 = vmatprep.subr.mxu0 0.0
    %377 = vmatpush1.msra.mxu0 0.0
    %378 = vmatprep.subr.mxu0 0.0
    %379 = vmatpush1.msra.mxu0 0.0
    %380 = vmatprep.subr.mxu0 0.0
    %381 = vmatpush1.msra.mxu0 0.0
    %382 = vmatprep.subr.mxu0 0.0
    %383 = vmatpush1.msra.mxu0 0.0
    %384 = vmatprep.subr.mxu0 0.0
    %385 = vmatpush1.msra.mxu0 0.0
    %386 = vmatprep.subr.mxu0 0.0
    %387 = vmatpush1.msra.mxu0 0.0
    %388 = vmatprep.subr.mxu0 0.0
    %389 = vmatpush1.msra.mxu0 0.0
    %390 = vmatprep.subr.mxu0 0.0
    %391 = vmatpush1.msra.mxu0 0.0
    %392 = vmatprep.subr.mxu0 0.0
    %393 = vmatpush1.msra.mxu0 0.0
    %394 = vmatprep.subr.mxu0 0.0
    %395 = vmatpush1.msra.mxu0 0.0
    %396 = vmatprep.subr.mxu0 0.0
    %397 = vmatpush1.msra.mxu0 0.0
    %398 = vmatprep.subr.mxu0 0.0
    %399 = vmatpush1.msra.mxu0 0.0
    %400 = vmatprep.subr.mxu0 0.0
    %401 = vmatpush1.msra.mxu0 0.0
    %402 = vmatprep.subr.mxu0 0.0
    %403 = vmatpush1.msra.mxu0 0.0
    %404 = vmatprep.subr.mxu0 0.0
    %405 = vmatpush1.msra.mxu0 0.0
    %406 = vmatprep.subr.mxu0 0.0
    %407 = vmatpush1.msra.mxu0 0.0
    %408 = vmatprep.subr.mxu0 0.0
    %409 = vmatpush1.msra.mxu0 0.0
    %410 = vmatprep.subr.mxu0 0.0
    %411 = vmatpush1.msra.mxu0 0.0
    %412 = vmatprep.subr.mxu0 0.0
    %413 = vmatpush1.msra.mxu0 0.0
    %414 = vmatprep.subr.mxu0 0.0
    %415 = vmatpush1.msra.mxu0 0.0
    %416 = vmatprep.subr.mxu0 0.0
    %417 = vmatpush1.msra.mxu0 0.0
    %418 = vmatprep.subr.mxu0 0.0
    %419 = vmatpush1.msra.mxu0 0.0
    %420 = vmatprep.subr.mxu0 0.0
    %421 = vmatpush1.msra.mxu0 0.0
    %422 = vmatprep.subr.mxu0 0.0
    %423 = vmatpush1.msra.mxu0 0.0
    %424 = vmatprep.subr.mxu0 0.0
    %425 = vmatpush1.msra.mxu0 0.0
    %426 = vmatprep.mubr.f32.mxu0 0.0
    %427 = vmatmul.mubr.f32.gmra.mrb[0].mxu0 %v360
    %v428 = vpop.f32.mrb[0].mxu0
    %v429 = vadd.f32 0.0, %v428
    %v430 = vpop.f32.mrb[0].mxu0
    %431 = vdwg.mxu0
    %v433 = vrot.slane %v174, 2
    %v435 = vadd.f32 %v429, %v433
    %v436 = vmax.f32 %v435, 0.0
    %v438 = vsel %vm210, %v436, 0
    %440 = vmatprep.subr.mxu0 0.0
    %441 = vmatpush1.msra.mxu0 %v186
    %442 = vmatprep.subr.mxu0 0.0
    %443 = vmatpush1.msra.mxu0 %v187
    %444 = vmatprep.subr.mxu0 0.0
    %445 = vmatpush1.msra.mxu0 %v188
    %446 = vmatprep.subr.mxu0 0.0
    %447 = vmatpush1.msra.mxu0 %v189
    %448 = vmatprep.subr.mxu0 0.0
    %449 = vmatpush1.msra.mxu0 0.0
    %450 = vmatprep.subr.mxu0 0.0
    %451 = vmatpush1.msra.mxu0 0.0
    %452 = vmatprep.subr.mxu0 0.0
    %453 = vmatpush1.msra.mxu0 0.0
    %454 = vmatprep.subr.mxu0 0.0
    %455 = vmatpush1.msra.mxu0 0.0
    %456 = vmatprep.subr.mxu0 0.0
    %457 = vmatpush1.msra.mxu0 0.0
    %458 = vmatprep.subr.mxu0 0.0
    %459 = vmatpush1.msra.mxu0 0.0
    %460 = vmatprep.subr.mxu0 0.0
    %461 = vmatpush1.msra.mxu0 0.0
    %462 = vmatprep.subr.mxu0 0.0
    %463 = vmatpush1.msra.mxu0 0.0
    %464 = vmatprep.subr.mxu0 0.0
    %465 = vmatpush1.msra.mxu0 0.0
    %466 = vmatprep.subr.mxu0 0.0
    %467 = vmatpush1.msra.mxu0 0.0
    %468 = vmatprep.subr.mxu0 0.0
    %469 = vmatpush1.msra.mxu0 0.0
    %470 = vmatprep.subr.mxu0 0.0
    %471 = vmatpush1.msra.mxu0 0.0
    %472 = vmatprep.subr.mxu0 0.0
    %473 = vmatpush1.msra.mxu0 0.0
    %474 = vmatprep.subr.mxu0 0.0
    %475 = vmatpush1.msra.mxu0 0.0
    %476 = vmatprep.subr.mxu0 0.0
    %477 = vmatpush1.msra.mxu0 0.0
    %478 = vmatprep.subr.mxu0 0.0
    %479 = vmatpush1.msra.mxu0 0.0
    %480 = vmatprep.subr.mxu0 0.0
    %481 = vmatpush1.msra.mxu0 0.0
    %482 = vmatprep.subr.mxu0 0.0
    %483 = vmatpush1.msra.mxu0 0.0
    %484 = vmatprep.subr.mxu0 0.0
    %485 = vmatpush1.msra.mxu0 0.0
    %486 = vmatprep.subr.mxu0 0.0
    %487 = vmatpush1.msra.mxu0 0.0
    %488 = vmatprep.subr.mxu0 0.0
    %489 = vmatpush1.msra.mxu0 0.0
    %490 = vmatprep.subr.mxu0 0.0
    %491 = vmatpush1.msra.mxu0 0.0
    %492 = vmatprep.subr.mxu0 0.0
    %493 = vmatpush1.msra.mxu0 0.0
    %494 = vmatprep.subr.mxu0 0.0
    %495 = vmatpush1.msra.mxu0 0.0
    %496 = vmatprep.subr.mxu0 0.0
    %497 = vmatpush1.msra.mxu0 0.0
    %498 = vmatprep.subr.mxu0 0.0
    %499 = vmatpush1.msra.mxu0 0.0
    %500 = vmatprep.subr.mxu0 0.0
    %501 = vmatpush1.msra.mxu0 0.0
    %502 = vmatprep.subr.mxu0 0.0
    %503 = vmatpush1.msra.mxu0 0.0
    %504 = vmatprep.mubr.f32.mxu0 0.0
    %505 = vmatmul.mubr.f32.gmra.mrb[0].mxu0 %v438
    %v506 = vpop.f32.mrb[0].mxu0
    %v507 = vadd.f32 %v199, %v506
    %v508 = vpop.f32.mrb[0].mxu0
    %509 = vdwg.mxu0
    %v510 = vmax.f32 %v507, 0.0
    %v512 = vsel %vm210, %v510, 0
    %514 = vmatprep.subr.mxu0 0.0
    %515 = vmatpush1.msra.mxu0 %v190
    %516 = vmatprep.subr.mxu0 0.0
    %517 = vmatpush1.msra.mxu0 %v191
    %518 = vmatprep.subr.mxu0 0.0
    %519 = vmatpush1.msra.mxu0 %v192
    %520 = vmatprep.subr.mxu0 0.0
    %521 = vmatpush1.msra.mxu0 %v193
    %522 = vmatprep.subr.mxu0 0.0
    %523 = vmatpush1.msra.mxu0 0.0
    %524 = vmatprep.subr.mxu0 0.0
    %525 = vmatpush1.msra.mxu0 0.0
    %526 = vmatprep.subr.mxu0 0.0
    %527 = vmatpush1.msra.mxu0 0.0
    %528 = vmatprep.subr.mxu0 0.0
    %529 = vmatpush1.msra.mxu0 0.0
    %530 = vmatprep.subr.mxu0 0.0
    %531 = vmatpush1.msra.mxu0 0.0
    %532 = vmatprep.subr.mxu0 0.0
    %533 = vmatpush1.msra.mxu0 0.0
    %534 = vmatprep.subr.mxu0 0.0
    %535 = vmatpush1.msra.mxu0 0.0
    %536 = vmatprep.subr.mxu0 0.0
    %537 = vmatpush1.msra.mxu0 0.0
    %538 = vmatprep.subr.mxu0 0.0
    %539 = vmatpush1.msra.mxu0 0.0
    %540 = vmatprep.subr.mxu0 0.0
    %541 = vmatpush1.msra.mxu0 0.0
    %542 = vmatprep.subr.mxu0 0.0
    %543 = vmatpush1.msra.mxu0 0.0
    %544 = vmatprep.subr.mxu0 0.0
    %545 = vmatpush1.msra.mxu0 0.0
    %546 = vmatprep.subr.mxu0 0.0
    %547 = vmatpush1.msra.mxu0 0.0
    %548 = vmatprep.subr.mxu0 0.0
    %549 = vmatpush1.msra.mxu0 0.0
    %550 = vmatprep.subr.mxu0 0.0
    %551 = vmatpush1.msra.mxu0 0.0
    %552 = vmatprep.subr.mxu0 0.0
    %553 = vmatpush1.msra.mxu0 0.0
    %554 = vmatprep.subr.mxu0 0.0
    %555 = vmatpush1.msra.mxu0 0.0
    %556 = vmatprep.subr.mxu0 0.0
    %557 = vmatpush1.msra.mxu0 0.0
    %558 = vmatprep.subr.mxu0 0.0
    %559 = vmatpush1.msra.mxu0 0.0
    %560 = vmatprep.subr.mxu0 0.0
    %561 = vmatpush1.msra.mxu0 0.0
    %562 = vmatprep.subr.mxu0 0.0
    %563 = vmatpush1.msra.mxu0 0.0
    %564 = vmatprep.subr.mxu0 0.0
    %565 = vmatpush1.msra.mxu0 0.0
    %566 = vmatprep.subr.mxu0 0.0
    %567 = vmatpush1.msra.mxu0 0.0
    %568 = vmatprep.subr.mxu0 0.0
    %569 = vmatpush1.msra.mxu0 0.0
    %570 = vmatprep.subr.mxu0 0.0
    %571 = vmatpush1.msra.mxu0 0.0
    %572 = vmatprep.subr.mxu0 0.0
    %573 = vmatpush1.msra.mxu0 0.0
    %574 = vmatprep.subr.mxu0 0.0
    %575 = vmatpush1.msra.mxu0 0.0
    %576 = vmatprep.subr.mxu0 0.0
    %577 = vmatpush1.msra.mxu0 0.0
    %578 = vmatprep.mubr.f32.mxu0 0.0
    %579 = vmatmul.mubr.f32.gmra.mrb[0].mxu0 %v512
    %v580 = vpop.f32.mrb[0].mxu0
    %v581 = vadd.f32 %v206, %v580
    %v582 = vpop.f32.mrb[0].mxu0
    %583 = vdwg.mxu0
    %v584 = vtanh.pop %v581
    %v585 = vrot.slane %v174, 4
    %v587 = vadd.f32 %v429, %v585
    %v588 = vmax.f32 %v587, 0.0
    %v590 = vsel %vm210, %v588, 0
    %592 = vmatprep.subr.mxu0 0.0
    %593 = vmatpush1.msra.mxu0 %v186
    %594 = vmatprep.subr.mxu0 0.0
    %595 = vmatpush1.msra.mxu0 %v187
    %596 = vmatprep.subr.mxu0 0.0
    %597 = vmatpush1.msra.mxu0 %v188
    %598 = vmatprep.subr.mxu0 0.0
    %599 = vmatpush1.msra.mxu0 %v189
    %600 = vmatprep.subr.mxu0 0.0
    %601 = vmatpush1.msra.mxu0 0.0
    %602 = vmatprep.subr.mxu0 0.0
    %603 = vmatpush1.msra.mxu0 0.0
    %604 = vmatprep.subr.mxu0 0.0
    %605 = vmatpush1.msra.mxu0 0.0
    %606 = vmatprep.subr.mxu0 0.0
    %607 = vmatpush1.msra.mxu0 0.0
    %608 = vmatprep.subr.mxu0 0.0
    %609 = vmatpush1.msra.mxu0 0.0
    %610 = vmatprep.subr.mxu0 0.0
    %611 = vmatpush1.msra.mxu0 0.0
    %612 = vmatprep.subr.mxu0 0.0
    %613 = vmatpush1.msra.mxu0 0.0
    %614 = vmatprep.subr.mxu0 0.0
    %615 = vmatpush1.msra.mxu0 0.0
    %616 = vmatprep.subr.mxu0 0.0
    %617 = vmatpush1.msra.mxu0 0.0
    %618 = vmatprep.subr.mxu0 0.0
    %619 = vmatpush1.msra.mxu0 0.0
    %620 = vmatprep.subr.mxu0 0.0
    %621 = vmatpush1.msra.mxu0 0.0
    %622 = vmatprep.subr.mxu0 0.0
    %623 = vmatpush1.msra.mxu0 0.0
    %624 = vmatprep.subr.mxu0 0.0
    %625 = vmatpush1.msra.mxu0 0.0
    %626 = vmatprep.subr.mxu0 0.0
    %627 = vmatpush1.msra.mxu0 0.0
    %628 = vmatprep.subr.mxu0 0.0
    %629 = vmatpush1.msra.mxu0 0.0
    %630 = vmatprep.subr.mxu0 0.0
    %631 = vmatpush1.msra.mxu0 0.0
    %632 = vmatprep.subr.mxu0 0.0
    %633 = vmatpush1.msra.mxu0 0.0
    %634 = vmatprep.subr.mxu0 0.0
    %635 = vmatpush1.msra.mxu0 0.0
    %636 = vmatprep.subr.mxu0 0.0
    %637 = vmatpush1.msra.mxu0 0.0
    %638 = vmatprep.subr.mxu0 0.0
    %639 = vmatpush1.msra.mxu0 0.0
    %640 = vmatprep.subr.mxu0 0.0
    %641 = vmatpush1.msra.mxu0 0.0
    %642 = vmatprep.subr.mxu0 0.0
    %643 = vmatpush1.msra.mxu0 0.0
    %644 = vmatprep.subr.mxu0 0.0
    %645 = vmatpush1.msra.mxu0 0.0
    %646 = vmatprep.subr.mxu0 0.0
    %647 = vmatpush1.msra.mxu0 0.0
    %648 = vmatprep.subr.mxu0 0.0
    %649 = vmatpush1.msra.mxu0 0.0
    %650 = vmatprep.subr.mxu0 0.0
    %651 = vmatpush1.msra.mxu0 0.0
    %652 = vmatprep.subr.mxu0 0.0
    %653 = vmatpush1.msra.mxu0 0.0
    %654 = vmatprep.subr.mxu0 0.0
    %655 = vmatpush1.msra.mxu0 0.0
    %656 = vmatprep.mubr.f32.mxu0 0.0
    %657 = vmatmul.mubr.f32.gmra.mrb[0].mxu0 %v590
    %v658 = vpop.f32.mrb[0].mxu0
    %v659 = vadd.f32 %v199, %v658
    %v660 = vpop.f32.mrb[0].mxu0
    %661 = vdwg.mxu0
    %v662 = vmax.f32 %v659, 0.0
    %v664 = vsel %vm210, %v662, 0
    %666 = vmatprep.subr.mxu0 0.0
    %667 = vmatpush1.msra.mxu0 %v190
    %668 = vmatprep.subr.mxu0 0.0
    %669 = vmatpush1.msra.mxu0 %v191
    %670 = vmatprep.subr.mxu0 0.0
    %671 = vmatpush1.msra.mxu0 %v192
    %672 = vmatprep.subr.mxu0 0.0
    %673 = vmatpush1.msra.mxu0 %v193
    %674 = vmatprep.subr.mxu0 0.0
    %675 = vmatpush1.msra.mxu0 0.0
    %676 = vmatprep.subr.mxu0 0.0
    %677 = vmatpush1.msra.mxu0 0.0
    %678 = vmatprep.subr.mxu0 0.0
    %679 = vmatpush1.msra.mxu0 0.0
    %680 = vmatprep.subr.mxu0 0.0
    %681 = vmatpush1.msra.mxu0 0.0
    %682 = vmatprep.subr.mxu0 0.0
    %683 = vmatpush1.msra.mxu0 0.0
    %684 = vmatprep.subr.mxu0 0.0
    %685 = vmatpush1.msra.mxu0 0.0
    %686 = vmatprep.subr.mxu0 0.0
    %687 = vmatpush1.msra.mxu0 0.0
    %688 = vmatprep.subr.mxu0 0.0
    %689 = vmatpush1.msra.mxu0 0.0
    %690 = vmatprep.subr.mxu0 0.0
    %691 = vmatpush1.msra.mxu0 0.0
    %692 = vmatprep.subr.mxu0 0.0
    %693 = vmatpush1.msra.mxu0 0.0
    %694 = vmatprep.subr.mxu0 0.0
    %695 = vmatpush1.msra.mxu0 0.0
    %696 = vmatprep.subr.mxu0 0.0
    %697 = vmatpush1.msra.mxu0 0.0
    %698 = vmatprep.subr.mxu0 0.0
    %699 = vmatpush1.msra.mxu0 0.0
    %700 = vmatprep.subr.mxu0 0.0
    %701 = vmatpush1.msra.mxu0 0.0
    %702 = vmatprep.subr.mxu0 0.0
    %703 = vmatpush1.msra.mxu0 0.0
    %704 = vmatprep.subr.mxu0 0.0
    %705 = vmatpush1.msra.mxu0 0.0
    %706 = vmatprep.subr.mxu0 0.0
    %707 = vmatpush1.msra.mxu0 0.0
    %708 = vmatprep.subr.mxu0 0.0
    %709 = vmatpush1.msra.mxu0 0.0
    %710 = vmatprep.subr.mxu0 0.0
    %711 = vmatpush1.msra.mxu0 0.0
    %712 = vmatprep.subr.mxu0 0.0
    %713 = vmatpush1.msra.mxu0 0.0
    %714 = vmatprep.subr.mxu0 0.0
    %715 = vmatpush1.msra.mxu0 0.0
    %716 = vmatprep.subr.mxu0 0.0
    %717 = vmatpush1.msra.mxu0 0.0
    %718 = vmatprep.subr.mxu0 0.0
    %719 = vmatpush1.msra.mxu0 0.0
    %720 = vmatprep.subr.mxu0 0.0
    %721 = vmatpush1.msra.mxu0 0.0
    %722 = vmatprep.subr.mxu0 0.0
    %723 = vmatpush1.msra.mxu0 0.0
    %724 = vmatprep.subr.mxu0 0.0
    %725 = vmatpush1.msra.mxu0 0.0
    %726 = vmatprep.subr.mxu0 0.0
    %727 = vmatpush1.msra.mxu0 0.0
    %728 = vmatprep.subr.mxu0 0.0
    %729 = vmatpush1.msra.mxu0 0.0
    %730 = vmatprep.mubr.f32.mxu0 0.0
    %731 = vmatmul.mubr.f32.gmra.mrb[0].mxu0 %v664
    %v732 = vpop.f32.mrb[0].mxu0
    %v733 = vadd.f32 %v206, %v732
    %v734 = vpop.f32.mrb[0].mxu0
    %735 = vdwg.mxu0
    %v736 = vtanh.pop %v733
    %v738 = vsel %vm210, %v736, 0
    %740 = vmatprep.subr.mxu0 0.0
    %741 = vmatpush1.msra.mxu0 %v182
    %742 = vmatprep.subr.mxu0 0.0
    %743 = vmatpush1.msra.mxu0 %v183
    %744 = vmatprep.subr.mxu0 0.0
    %745 = vmatpush1.msra.mxu0 %v184
    %746 = vmatprep.subr.mxu0 0.0
    %747 = vmatpush1.msra.mxu0 %v185
    %748 = vmatprep.subr.mxu0 0.0
    %749 = vmatpush1.msra.mxu0 0.0
    %750 = vmatprep.subr.mxu0 0.0
    %751 = vmatpush1.msra.mxu0 0.0
    %752 = vmatprep.subr.mxu0 0.0
    %753 = vmatpush1.msra.mxu0 0.0
    %754 = vmatprep.subr.mxu0 0.0
    %755 = vmatpush1.msra.mxu0 0.0
    %756 = vmatprep.subr.mxu0 0.0
    %757 = vmatpush1.msra.mxu0 0.0
    %758 = vmatprep.subr.mxu0 0.0
    %759 = vmatpush1.msra.mxu0 0.0
    %760 = vmatprep.subr.mxu0 0.0
    %761 = vmatpush1.msra.mxu0 0.0
    %762 = vmatprep.subr.mxu0 0.0
    %763 = vmatpush1.msra.mxu0 0.0
    %764 = vmatprep.subr.mxu0 0.0
    %765 = vmatpush1.msra.mxu0 0.0
    %766 = vmatprep.subr.mxu0 0.0
    %767 = vmatpush1.msra.mxu0 0.0
    %768 = vmatprep.subr.mxu0 0.0
    %769 = vmatpush1.msra.mxu0 0.0
    %770 = vmatprep.subr.mxu0 0.0
    %771 = vmatpush1.msra.mxu0 0.0
    %772 = vmatprep.subr.mxu0 0.0
    %773 = vmatpush1.msra.mxu0 0.0
    %774 = vmatprep.subr.mxu0 0.0
    %775 = vmatpush1.msra.mxu0 0.0
    %776 = vmatprep.subr.mxu0 0.0
    %777 = vmatpush1.msra.mxu0 0.0
    %778 = vmatprep.subr.mxu0 0.0
    %779 = vmatpush1.msra.mxu0 0.0
    %780 = vmatprep.subr.mxu0 0.0
    %781 = vmatpush1.msra.mxu0 0.0
    %782 = vmatprep.subr.mxu0 0.0
    %783 = vmatpush1.msra.mxu0 0.0
    %784 = vmatprep.subr.mxu0 0.0
    %785 = vmatpush1.msra.mxu0 0.0
    %786 = vmatprep.subr.mxu0 0.0
    %787 = vmatpush1.msra.mxu0 0.0
    %788 = vmatprep.subr.mxu0 0.0
    %789 = vmatpush1.msra.mxu0 0.0
    %790 = vmatprep.subr.mxu0 0.0
    %791 = vmatpush1.msra.mxu0 0.0
    %792 = vmatprep.subr.mxu0 0.0
    %793 = vmatpush1.msra.mxu0 0.0
    %794 = vmatprep.subr.mxu0 0.0
    %795 = vmatpush1.msra.mxu0 0.0
    %796 = vmatprep.subr.mxu0 0.0
    %797 = vmatpush1.msra.mxu0 0.0
    %798 = vmatprep.subr.mxu0 0.0
    %799 = vmatpush1.msra.mxu0 0.0
    %800 = vmatprep.subr.mxu0 0.0
    %801 = vmatpush1.msra.mxu0 0.0
    %802 = vmatprep.subr.mxu0 0.0
    %803 = vmatpush1.msra.mxu0 0.0
    %804 = vmatprep.mubr.f32.mxu0 0.0
    %805 = vmatmul.mubr.f32.gmra.mrb[0].mxu0 %v738
    %v806 = vpop.f32.mrb[0].mxu0
    %v807 = vadd.f32 0.0, %v806
    %v808 = vpop.f32.mrb[0].mxu0
    %809 = vdwg.mxu0
    %v810 = vrot.slane %v174, 6
    %v812 = vadd.f32 %v807, %v810
    %v813 = vmax.f32 %v812, 0.0
    %v815 = vsel %vm210, %v813, 0
    %817 = vmatprep.subr.mxu0 0.0
    %818 = vmatpush1.msra.mxu0 %v186
    %819 = vmatprep.subr.mxu0 0.0
    %820 = vmatpush1.msra.mxu0 %v187
    %821 = vmatprep.subr.mxu0 0.0
    %822 = vmatpush1.msra.mxu0 %v188
    %823 = vmatprep.subr.mxu0 0.0
    %824 = vmatpush1.msra.mxu0 %v189
    %825 = vmatprep.subr.mxu0 0.0
    %826 = vmatpush1.msra.mxu0 0.0
    %827 = vmatprep.subr.mxu0 0.0
    %828 = vmatpush1.msra.mxu0 0.0
    %829 = vmatprep.subr.mxu0 0.0
    %830 = vmatpush1.msra.mxu0 0.0
    %831 = vmatprep.subr.mxu0 0.0
    %832 = vmatpush1.msra.mxu0 0.0
    %833 = vmatprep.subr.mxu0 0.0
    %834 = vmatpush1.msra.mxu0 0.0
    %835 = vmatprep.subr.mxu0 0.0
    %836 = vmatpush1.msra.mxu0 0.0
    %837 = vmatprep.subr.mxu0 0.0
    %838 = vmatpush1.msra.mxu0 0.0
    %839 = vmatprep.subr.mxu0 0.0
    %840 = vmatpush1.msra.mxu0 0.0
    %841 = vmatprep.subr.mxu0 0.0
    %842 = vmatpush1.msra.mxu0 0.0
    %843 = vmatprep.subr.mxu0 0.0
    %844 = vmatpush1.msra.mxu0 0.0
    %845 = vmatprep.subr.mxu0 0.0
    %846 = vmatpush1.msra.mxu0 0.0
    %847 = vmatprep.subr.mxu0 0.0
    %848 = vmatpush1.msra.mxu0 0.0
    %849 = vmatprep.subr.mxu0 0.0
    %850 = vmatpush1.msra.mxu0 0.0
    %851 = vmatprep.subr.mxu0 0.0
    %852 = vmatpush1.msra.mxu0 0.0
    %853 = vmatprep.subr.mxu0 0.0
    %854 = vmatpush1.msra.mxu0 0.0
    %855 = vmatprep.subr.mxu0 0.0
    %856 = vmatpush1.msra.mxu0 0.0
    %857 = vmatprep.subr.mxu0 0.0
    %858 = vmatpush1.msra.mxu0 0.0
    %859 = vmatprep.subr.mxu0 0.0
    %860 = vmatpush1.msra.mxu0 0.0
    %861 = vmatprep.subr.mxu0 0.0
    %862 = vmatpush1.msra.mxu0 0.0
    %863 = vmatprep.subr.mxu0 0.0
    %864 = vmatpush1.msra.mxu0 0.0
    %865 = vmatprep.subr.mxu0 0.0
    %866 = vmatpush1.msra.mxu0 0.0
    %867 = vmatprep.subr.mxu0 0.0
    %868 = vmatpush1.msra.mxu0 0.0
    %869 = vmatprep.subr.mxu0 0.0
    %870 = vmatpush1.msra.mxu0 0.0
    %871 = vmatprep.subr.mxu0 0.0
    %872 = vmatpush1.msra.mxu0 0.0
    %873 = vmatprep.subr.mxu0 0.0
    %874 = vmatpush1.msra.mxu0 0.0
    %875 = vmatprep.subr.mxu0 0.0
    %876 = vmatpush1.msra.mxu0 0.0
    %877 = vmatprep.subr.mxu0 0.0
    %878 = vmatpush1.msra.mxu0 0.0
    %879 = vmatprep.subr.mxu0 0.0
    %880 = vmatpush1.msra.mxu0 0.0
    %881 = vmatprep.mubr.f32.mxu0 0.0
    %882 = vmatmul.mubr.f32.gmra.mrb[0].mxu0 %v815
    %v883 = vpop.f32.mrb[0].mxu0
    %v884 = vadd.f32 %v199, %v883
    %v885 = vpop.f32.mrb[0].mxu0
    %886 = vdwg.mxu0
    %v887 = vmax.f32 %v884, 0.0
    %v889 = vsel %vm210, %v887, 0
    %891 = vmatprep.subr.mxu0 0.0
    %892 = vmatpush1.msra.mxu0 %v190
    %893 = vmatprep.subr.mxu0 0.0
    %894 = vmatpush1.msra.mxu0 %v191
    %895 = vmatprep.subr.mxu0 0.0
    %896 = vmatpush1.msra.mxu0 %v192
    %897 = vmatprep.subr.mxu0 0.0
    %898 = vmatpush1.msra.mxu0 %v193
    %899 = vmatprep.subr.mxu0 0.0
    %900 = vmatpush1.msra.mxu0 0.0
    %901 = vmatprep.subr.mxu0 0.0
    %902 = vmatpush1.msra.mxu0 0.0
    %903 = vmatprep.subr.mxu0 0.0
    %904 = vmatpush1.msra.mxu0 0.0
    %905 = vmatprep.subr.mxu0 0.0
    %906 = vmatpush1.msra.mxu0 0.0
    %907 = vmatprep.subr.mxu0 0.0
    %908 = vmatpush1.msra.mxu0 0.0
    %909 = vmatprep.subr.mxu0 0.0
    %910 = vmatpush1.msra.mxu0 0.0
    %911 = vmatprep.subr.mxu0 0.0
    %912 = vmatpush1.msra.mxu0 0.0
    %913 = vmatprep.subr.mxu0 0.0
    %914 = vmatpush1.msra.mxu0 0.0
    %915 = vmatprep.subr.mxu0 0.0
    %916 = vmatpush1.msra.mxu0 0.0
    %917 = vmatprep.subr.mxu0 0.0
    %918 = vmatpush1.msra.mxu0 0.0
    %919 = vmatprep.subr.mxu0 0.0
    %920 = vmatpush1.msra.mxu0 0.0
    %921 = vmatprep.subr.mxu0 0.0
    %922 = vmatpush1.msra.mxu0 0.0
    %923 = vmatprep.subr.mxu0 0.0
    %924 = vmatpush1.msra.mxu0 0.0
    %925 = vmatprep.subr.mxu0 0.0
    %926 = vmatpush1.msra.mxu0 0.0
    %927 = vmatprep.subr.mxu0 0.0
    %928 = vmatpush1.msra.mxu0 0.0
    %929 = vmatprep.subr.mxu0 0.0
    %930 = vmatpush1.msra.mxu0 0.0
    %931 = vmatprep.subr.mxu0 0.0
    %932 = vmatpush1.msra.mxu0 0.0
    %933 = vmatprep.subr.mxu0 0.0
    %934 = vmatpush1.msra.mxu0 0.0
    %935 = vmatprep.subr.mxu0 0.0
    %936 = vmatpush1.msra.mxu0 0.0
    %937 = vmatprep.subr.mxu0 0.0
    %938 = vmatpush1.msra.mxu0 0.0
    %939 = vmatprep.subr.mxu0 0.0
    %940 = vmatpush1.msra.mxu0 0.0
    %941 = vmatprep.subr.mxu0 0.0
    %942 = vmatpush1.msra.mxu0 0.0
    %943 = vmatprep.subr.mxu0 0.0
    %944 = vmatpush1.msra.mxu0 0.0
    %945 = vmatprep.subr.mxu0 0.0
    %946 = vmatpush1.msra.mxu0 0.0
    %947 = vmatprep.subr.mxu0 0.0
    %948 = vmatpush1.msra.mxu0 0.0
    %949 = vmatprep.subr.mxu0 0.0
    %950 = vmatpush1.msra.mxu0 0.0
    %951 = vmatprep.subr.mxu0 0.0
    %952 = vmatpush1.msra.mxu0 0.0
    %953 = vmatprep.subr.mxu0 0.0
    %954 = vmatpush1.msra.mxu0 0.0
    %955 = vmatprep.mubr.f32.mxu0 0.0
    %956 = vmatmul.mubr.f32.gmra.mrb[0].mxu0 %v889
    %v957 = vpop.f32.mrb[0].mxu0
    %v958 = vadd.f32 %v206, %v957
    %v959 = vpop.f32.mrb[0].mxu0
    %960 = vdwg.mxu0
    %v961 = vtanh.pop %v958
    %v962 = vadd.f32 %v807, %v179
    %v963 = vmax.f32 %v962, 0.0
    %v965 = vsel %vm210, %v963, 0
    %967 = vmatprep.subr.mxu0 0.0
    %968 = vmatpush1.msra.mxu0 %v186
    %969 = vmatprep.subr.mxu0 0.0
    %970 = vmatpush1.msra.mxu0 %v187
    %971 = vmatprep.subr.mxu0 0.0
    %972 = vmatpush1.msra.mxu0 %v188
    %973 = vmatprep.subr.mxu0 0.0
    %974 = vmatpush1.msra.mxu0 %v189
    %975 = vmatprep.subr.mxu0 0.0
    %976 = vmatpush1.msra.mxu0 0.0
    %977 = vmatprep.subr.mxu0 0.0
    %978 = vmatpush1.msra.mxu0 0.0
    %979 = vmatprep.subr.mxu0 0.0
    %980 = vmatpush1.msra.mxu0 0.0
    %981 = vmatprep.subr.mxu0 0.0
    %982 = vmatpush1.msra.mxu0 0.0
    %983 = vmatprep.subr.mxu0 0.0
    %984 = vmatpush1.msra.mxu0 0.0
    %985 = vmatprep.subr.mxu0 0.0
    %986 = vmatpush1.msra.mxu0 0.0
    %987 = vmatprep.subr.mxu0 0.0
    %988 = vmatpush1.msra.mxu0 0.0
    %989 = vmatprep.subr.mxu0 0.0
    %990 = vmatpush1.msra.mxu0 0.0
    %991 = vmatprep.subr.mxu0 0.0
    %992 = vmatpush1.msra.mxu0 0.0
    %993 = vmatprep.subr.mxu0 0.0
    %994 = vmatpush1.msra.mxu0 0.0
    %995 = vmatprep.subr.mxu0 0.0
    %996 = vmatpush1.msra.mxu0 0.0
    %997 = vmatprep.subr.mxu0 0.0
    %998 = vmatpush1.msra.mxu0 0.0
    %999 = vmatprep.subr.mxu0 0.0
    %1000 = vmatpush1.msra.mxu0 0.0
    %1001 = vmatprep.subr.mxu0 0.0
    %1002 = vmatpush1.msra.mxu0 0.0
    %1003 = vmatprep.subr.mxu0 0.0
    %1004 = vmatpush1.msra.mxu0 0.0
    %1005 = vmatprep.subr.mxu0 0.0
    %1006 = vmatpush1.msra.mxu0 0.0
    %1007 = vmatprep.subr.mxu0 0.0
    %1008 = vmatpush1.msra.mxu0 0.0
    %1009 = vmatprep.subr.mxu0 0.0
    %1010 = vmatpush1.msra.mxu0 0.0
    %1011 = vmatprep.subr.mxu0 0.0
    %1012 = vmatpush1.msra.mxu0 0.0
    %1013 = vmatprep.subr.mxu0 0.0
    %1014 = vmatpush1.msra.mxu0 0.0
    %1015 = vmatprep.subr.mxu0 0.0
    %1016 = vmatpush1.msra.mxu0 0.0
    %1017 = vmatprep.subr.mxu0 0.0
    %1018 = vmatpush1.msra.mxu0 0.0
    %1019 = vmatprep.subr.mxu0 0.0
    %1020 = vmatpush1.msra.mxu0 0.0
    %1021 = vmatprep.subr.mxu0 0.0
    %1022 = vmatpush1.msra.mxu0 0.0
    %1023 = vmatprep.subr.mxu0 0.0
    %1024 = vmatpush1.msra.mxu0 0.0
    %1025 = vmatprep.subr.mxu0 0.0
    %1026 = vmatpush1.msra.mxu0 0.0
    %1027 = vmatprep.subr.mxu0 0.0
    %1028 = vmatpush1.msra.mxu0 0.0
    %1029 = vmatprep.subr.mxu0 0.0
    %1030 = vmatpush1.msra.mxu0 0.0
    %1031 = vmatprep.mubr.f32.mxu0 0.0
    %1032 = vmatmul.mubr.f32.gmra.mrb[0].mxu0 %v965
    %v1033 = vpop.f32.mrb[0].mxu0
    %v1034 = vadd.f32 %v199, %v1033
    %v1035 = vpop.f32.mrb[0].mxu0
    %1036 = vdwg.mxu0
    %v1037 = vmax.f32 %v1034, 0.0
    %v1039 = vsel %vm210, %v1037, 0
    %1041 = vmatprep.subr.mxu0 0.0
    %1042 = vmatpush1.msra.mxu0 %v190
    %1043 = vmatprep.subr.mxu0 0.0
    %1044 = vmatpush1.msra.mxu0 %v191
    %1045 = vmatprep.subr.mxu0 0.0
    %1046 = vmatpush1.msra.mxu0 %v192
    %1047 = vmatprep.subr.mxu0 0.0
    %1048 = vmatpush1.msra.mxu0 %v193
    %1049 = vmatprep.subr.mxu0 0.0
    %1050 = vmatpush1.msra.mxu0 0.0
    %1051 = vmatprep.subr.mxu0 0.0
    %1052 = vmatpush1.msra.mxu0 0.0
    %1053 = vmatprep.subr.mxu0 0.0
    %1054 = vmatpush1.msra.mxu0 0.0
    %1055 = vmatprep.subr.mxu0 0.0
    %1056 = vmatpush1.msra.mxu0 0.0
    %1057 = vmatprep.subr.mxu0 0.0
    %1058 = vmatpush1.msra.mxu0 0.0
    %1059 = vmatprep.subr.mxu0 0.0
    %1060 = vmatpush1.msra.mxu0 0.0
    %1061 = vmatprep.subr.mxu0 0.0
    %1062 = vmatpush1.msra.mxu0 0.0
    %1063 = vmatprep.subr.mxu0 0.0
    %1064 = vmatpush1.msra.mxu0 0.0
    %1065 = vmatprep.subr.mxu0 0.0
    %1066 = vmatpush1.msra.mxu0 0.0
    %1067 = vmatprep.subr.mxu0 0.0
    %1068 = vmatpush1.msra.mxu0 0.0
    %1069 = vmatprep.subr.mxu0 0.0
    %1070 = vmatpush1.msra.mxu0 0.0
    %1071 = vmatprep.subr.mxu0 0.0
    %1072 = vmatpush1.msra.mxu0 0.0
    %1073 = vmatprep.subr.mxu0 0.0
    %1074 = vmatpush1.msra.mxu0 0.0
    %1075 = vmatprep.subr.mxu0 0.0
    %1076 = vmatpush1.msra.mxu0 0.0
    %1077 = vmatprep.subr.mxu0 0.0
    %1078 = vmatpush1.msra.mxu0 0.0
    %1079 = vmatprep.subr.mxu0 0.0
    %1080 = vmatpush1.msra.mxu0 0.0
    %1081 = vmatprep.subr.mxu0 0.0
    %1082 = vmatpush1.msra.mxu0 0.0
    %1083 = vmatprep.subr.mxu0 0.0
    %1084 = vmatpush1.msra.mxu0 0.0
    %1085 = vmatprep.subr.mxu0 0.0
    %1086 = vmatpush1.msra.mxu0 0.0
    %1087 = vmatprep.subr.mxu0 0.0
    %1088 = vmatpush1.msra.mxu0 0.0
    %1089 = vmatprep.subr.mxu0 0.0
    %1090 = vmatpush1.msra.mxu0 0.0
    %1091 = vmatprep.subr.mxu0 0.0
    %1092 = vmatpush1.msra.mxu0 0.0
    %1093 = vmatprep.subr.mxu0 0.0
    %1094 = vmatpush1.msra.mxu0 0.0
    %1095 = vmatprep.subr.mxu0 0.0
    %1096 = vmatpush1.msra.mxu0 0.0
    %1097 = vmatprep.subr.mxu0 0.0
    %1098 = vmatpush1.msra.mxu0 0.0
    %1099 = vmatprep.subr.mxu0 0.0
    %1100 = vmatpush1.msra.mxu0 0.0
    %1101 = vmatprep.subr.mxu0 0.0
    %1102 = vmatpush1.msra.mxu0 0.0
    %1103 = vmatprep.subr.mxu0 0.0
    %1104 = vmatpush1.msra.mxu0 0.0
    %1105 = vmatprep.mubr.f32.mxu0 0.0
    %1106 = vmatmul.mubr.f32.gmra.mrb[0].mxu0 %v1039
    %v1107 = vpop.f32.mrb[0].mxu0
    %v1108 = vadd.f32 %v206, %v1107
    %v1109 = vpop.f32.mrb[0].mxu0
    %1110 = vdwg.mxu0
    %v1111 = vtanh.pop %v1108
    %v1113 = vsel %vm210, %v1111, 0
    %1115 = vmatprep.subr.mxu0 0.0
    %1116 = vmatpush1.msra.mxu0 %v182
    %1117 = vmatprep.subr.mxu0 0.0
    %1118 = vmatpush1.msra.mxu0 %v183
    %1119 = vmatprep.subr.mxu0 0.0
    %1120 = vmatpush1.msra.mxu0 %v184
    %1121 = vmatprep.subr.mxu0 0.0
    %1122 = vmatpush1.msra.mxu0 %v185
    %1123 = vmatprep.subr.mxu0 0.0
    %1124 = vmatpush1.msra.mxu0 0.0
    %1125 = vmatprep.subr.mxu0 0.0
    %1126 = vmatpush1.msra.mxu0 0.0
    %1127 = vmatprep.subr.mxu0 0.0
    %1128 = vmatpush1.msra.mxu0 0.0
    %1129 = vmatprep.subr.mxu0 0.0
    %1130 = vmatpush1.msra.mxu0 0.0
    %1131 = vmatprep.subr.mxu0 0.0
    %1132 = vmatpush1.msra.mxu0 0.0
    %1133 = vmatprep.subr.mxu0 0.0
    %1134 = vmatpush1.msra.mxu0 0.0
    %1135 = vmatprep.subr.mxu0 0.0
    %1136 = vmatpush1.msra.mxu0 0.0
    %1137 = vmatprep.subr.mxu0 0.0
    %1138 = vmatpush1.msra.mxu0 0.0
    %1139 = vmatprep.subr.mxu0 0.0
    %1140 = vmatpush1.msra.mxu0 0.0
    %1141 = vmatprep.subr.mxu0 0.0
    %1142 = vmatpush1.msra.mxu0 0.0
    %1143 = vmatprep.subr.mxu0 0.0
    %1144 = vmatpush1.msra.mxu0 0.0
    %1145 = vmatprep.subr.mxu0 0.0
    %1146 = vmatpush1.msra.mxu0 0.0
    %1147 = vmatprep.subr.mxu0 0.0
    %1148 = vmatpush1.msra.mxu0 0.0
    %1149 = vmatprep.subr.mxu0 0.0
    %1150 = vmatpush1.msra.mxu0 0.0
    %1151 = vmatprep.subr.mxu0 0.0
    %1152 = vmatpush1.msra.mxu0 0.0
    %1153 = vmatprep.subr.mxu0 0.0
    %1154 = vmatpush1.msra.mxu0 0.0
    %1155 = vmatprep.subr.mxu0 0.0
    %1156 = vmatpush1.msra.mxu0 0.0
    %1157 = vmatprep.subr.mxu0 0.0
    %1158 = vmatpush1.msra.mxu0 0.0
    %1159 = vmatprep.subr.mxu0 0.0
    %1160 = vmatpush1.msra.mxu0 0.0
    %1161 = vmatprep.subr.mxu0 0.0
    %1162 = vmatpush1.msra.mxu0 0.0
    %1163 = vmatprep.subr.mxu0 0.0
    %1164 = vmatpush1.msra.mxu0 0.0
    %1165 = vmatprep.subr.mxu0 0.0
    %1166 = vmatpush1.msra.mxu0 0.0
    %1167 = vmatprep.subr.mxu0 0.0
    %1168 = vmatpush1.msra.mxu0 0.0
    %1169 = vmatprep.subr.mxu0 0.0
    %1170 = vmatpush1.msra.mxu0 0.0
    %1171 = vmatprep.subr.mxu0 0.0
    %1172 = vmatpush1.msra.mxu0 0.0
    %1173 = vmatprep.subr.mxu0 0.0
    %1174 = vmatpush1.msra.mxu0 0.0
    %1175 = vmatprep.subr.mxu0 0.0
    %1176 = vmatpush1.msra.mxu0 0.0
    %1177 = vmatprep.subr.mxu0 0.0
    %1178 = vmatpush1.msra.mxu0 0.0
    %1179 = vmatprep.mubr.f32.mxu0 0.0
    %1180 = vmatmul.mubr.f32.gmra.mrb[0].mxu0 %v1113
    %v1181 = vpop.f32.mrb[0].mxu0
    %v1182 = vadd.f32 0.0, %v1181
    %v1183 = vpop.f32.mrb[0].mxu0
    %1184 = vdwg.mxu0
    %v1186 = vrot.slane %v179, 2
    %v1188 = vadd.f32 %v1182, %v1186
    %v1189 = vmax.f32 %v1188, 0.0
    %v1191 = vsel %vm210, %v1189, 0
    %1193 = vmatprep.subr.mxu0 0.0
    %1194 = vmatpush1.msra.mxu0 %v186
    %1195 = vmatprep.subr.mxu0 0.0
    %1196 = vmatpush1.msra.mxu0 %v187
    %1197 = vmatprep.subr.mxu0 0.0
    %1198 = vmatpush1.msra.mxu0 %v188
    %1199 = vmatprep.subr.mxu0 0.0
    %1200 = vmatpush1.msra.mxu0 %v189
    %1201 = vmatprep.subr.mxu0 0.0
    %1202 = vmatpush1.msra.mxu0 0.0
    %1203 = vmatprep.subr.mxu0 0.0
    %1204 = vmatpush1.msra.mxu0 0.0
    %1205 = vmatprep.subr.mxu0 0.0
    %1206 = vmatpush1.msra.mxu0 0.0
    %1207 = vmatprep.subr.mxu0 0.0
    %1208 = vmatpush1.msra.mxu0 0.0
    %1209 = vmatprep.subr.mxu0 0.0
    %1210 = vmatpush1.msra.mxu0 0.0
    %1211 = vmatprep.subr.mxu0 0.0
    %1212 = vmatpush1.msra.mxu0 0.0
    %1213 = vmatprep.subr.mxu0 0.0
    %1214 = vmatpush1.msra.mxu0 0.0
    %1215 = vmatprep.subr.mxu0 0.0
    %1216 = vmatpush1.msra.mxu0 0.0
    %1217 = vmatprep.subr.mxu0 0.0
    %1218 = vmatpush1.msra.mxu0 0.0
    %1219 = vmatprep.subr.mxu0 0.0
    %1220 = vmatpush1.msra.mxu0 0.0
    %1221 = vmatprep.subr.mxu0 0.0
    %1222 = vmatpush1.msra.mxu0 0.0
    %1223 = vmatprep.subr.mxu0 0.0
    %1224 = vmatpush1.msra.mxu0 0.0
    %1225 = vmatprep.subr.mxu0 0.0
    %1226 = vmatpush1.msra.mxu0 0.0
    %1227 = vmatprep.subr.mxu0 0.0
    %1228 = vmatpush1.msra.mxu0 0.0
    %1229 = vmatprep.subr.mxu0 0.0
    %1230 = vmatpush1.msra.mxu0 0.0
    %1231 = vmatprep.subr.mxu0 0.0
    %1232 = vmatpush1.msra.mxu0 0.0
    %1233 = vmatprep.subr.mxu0 0.0
    %1234 = vmatpush1.msra.mxu0 0.0
    %1235 = vmatprep.subr.mxu0 0.0
    %1236 = vmatpush1.msra.mxu0 0.0
    %1237 = vmatprep.subr.mxu0 0.0
    %1238 = vmatpush1.msra.mxu0 0.0
    %1239 = vmatprep.subr.mxu0 0.0
    %1240 = vmatpush1.msra.mxu0 0.0
    %1241 = vmatprep.subr.mxu0 0.0
    %1242 = vmatpush1.msra.mxu0 0.0
    %1243 = vmatprep.subr.mxu0 0.0
    %1244 = vmatpush1.msra.mxu0 0.0
    %1245 = vmatprep.subr.mxu0 0.0
    %1246 = vmatpush1.msra.mxu0 0.0
    %1247 = vmatprep.subr.mxu0 0.0
    %1248 = vmatpush1.msra.mxu0 0.0
    %1249 = vmatprep.subr.mxu0 0.0
    %1250 = vmatpush1.msra.mxu0 0.0
    %1251 = vmatprep.subr.mxu0 0.0
    %1252 = vmatpush1.msra.mxu0 0.0
    %1253 = vmatprep.subr.mxu0 0.0
    %1254 = vmatpush1.msra.mxu0 0.0
    %1255 = vmatprep.subr.mxu0 0.0
    %1256 = vmatpush1.msra.mxu0 0.0
    %1257 = vmatprep.mubr.f32.mxu0 0.0
    %1258 = vmatmul.mubr.f32.gmra.mrb[0].mxu0 %v1191
    %v1259 = vpop.f32.mrb[0].mxu0
    %v1260 = vadd.f32 %v199, %v1259
    %v1261 = vpop.f32.mrb[0].mxu0
    %1262 = vdwg.mxu0
    %v1263 = vmax.f32 %v1260, 0.0
    %v1265 = vsel %vm210, %v1263, 0
    %1267 = vmatprep.subr.mxu0 0.0
    %1268 = vmatpush1.msra.mxu0 %v190
    %1269 = vmatprep.subr.mxu0 0.0
    %1270 = vmatpush1.msra.mxu0 %v191
    %1271 = vmatprep.subr.mxu0 0.0
    %1272 = vmatpush1.msra.mxu0 %v192
    %1273 = vmatprep.subr.mxu0 0.0
    %1274 = vmatpush1.msra.mxu0 %v193
    %1275 = vmatprep.subr.mxu0 0.0
    %1276 = vmatpush1.msra.mxu0 0.0
    %1277 = vmatprep.subr.mxu0 0.0
    %1278 = vmatpush1.msra.mxu0 0.0
    %1279 = vmatprep.subr.mxu0 0.0
    %1280 = vmatpush1.msra.mxu0 0.0
    %1281 = vmatprep.subr.mxu0 0.0
    %1282 = vmatpush1.msra.mxu0 0.0
    %1283 = vmatprep.subr.mxu0 0.0
    %1284 = vmatpush1.msra.mxu0 0.0
    %1285 = vmatprep.subr.mxu0 0.0
    %1286 = vmatpush1.msra.mxu0 0.0
    %1287 = vmatprep.subr.mxu0 0.0
    %1288 = vmatpush1.msra.mxu0 0.0
    %1289 = vmatprep.subr.mxu0 0.0
    %1290 = vmatpush1.msra.mxu0 0.0
    %1291 = vmatprep.subr.mxu0 0.0
    %1292 = vmatpush1.msra.mxu0 0.0
    %1293 = vmatprep.subr.mxu0 0.0
    %1294 = vmatpush1.msra.mxu0 0.0
    %1295 = vmatprep.subr.mxu0 0.0
    %1296 = vmatpush1.msra.mxu0 0.0
    %1297 = vmatprep.subr.mxu0 0.0
    %1298 = vmatpush1.msra.mxu0 0.0
    %1299 = vmatprep.subr.mxu0 0.0
    %1300 = vmatpush1.msra.mxu0 0.0
    %1301 = vmatprep.subr.mxu0 0.0
    %1302 = vmatpush1.msra.mxu0 0.0
    %1303 = vmatprep.subr.mxu0 0.0
    %1304 = vmatpush1.msra.mxu0 0.0
    %1305 = vmatprep.subr.mxu0 0.0
    %1306 = vmatpush1.msra.mxu0 0.0
    %1307 = vmatprep.subr.mxu0 0.0
    %1308 = vmatpush1.msra.mxu0 0.0
    %1309 = vmatprep.subr.mxu0 0.0
    %1310 = vmatpush1.msra.mxu0 0.0
    %1311 = vmatprep.subr.mxu0 0.0
    %1312 = vmatpush1.msra.mxu0 0.0
    %1313 = vmatprep.subr.mxu0 0.0
    %1314 = vmatpush1.msra.mxu0 0.0
    %1315 = vmatprep.subr.mxu0 0.0
    %1316 = vmatpush1.msra.mxu0 0.0
    %1317 = vmatprep.subr.mxu0 0.0
    %1318 = vmatpush1.msra.mxu0 0.0
    %1319 = vmatprep.subr.mxu0 0.0
    %1320 = vmatpush1.msra.mxu0 0.0
    %1321 = vmatprep.subr.mxu0 0.0
    %1322 = vmatpush1.msra.mxu0 0.0
    %1323 = vmatprep.subr.mxu0 0.0
    %1324 = vmatpush1.msra.mxu0 0.0
    %1325 = vmatprep.subr.mxu0 0.0
    %1326 = vmatpush1.msra.mxu0 0.0
    %1327 = vmatprep.subr.mxu0 0.0
    %1328 = vmatpush1.msra.mxu0 0.0
    %1329 = vmatprep.subr.mxu0 0.0
    %1330 = vmatpush1.msra.mxu0 0.0
    %1331 = vmatprep.mubr.f32.mxu0 0.0
    %1332 = vmatmul.mubr.f32.gmra.mrb[0].mxu0 %v1265
    %v1333 = vpop.f32.mrb[0].mxu0
    %v1334 = vadd.f32 %v206, %v1333
    %v1335 = vpop.f32.mrb[0].mxu0
    %1336 = vdwg.mxu0
    %v1337 = vtanh.pop %v1334
    %v1338 = vrot.slane %v179, 4
    %v1340 = vadd.f32 %v1182, %v1338
    %v1341 = vmax.f32 %v1340, 0.0
    %v1343 = vsel %vm210, %v1341, 0
    %1345 = vmatprep.subr.mxu0 0.0
    %1346 = vmatpush1.msra.mxu0 %v186
    %1347 = vmatprep.subr.mxu0 0.0
    %1348 = vmatpush1.msra.mxu0 %v187
    %1349 = vmatprep.subr.mxu0 0.0
    %1350 = vmatpush1.msra.mxu0 %v188
    %1351 = vmatprep.subr.mxu0 0.0
    %1352 = vmatpush1.msra.mxu0 %v189
    %1353 = vmatprep.subr.mxu0 0.0
    %1354 = vmatpush1.msra.mxu0 0.0
    %1355 = vmatprep.subr.mxu0 0.0
    %1356 = vmatpush1.msra.mxu0 0.0
    %1357 = vmatprep.subr.mxu0 0.0
    %1358 = vmatpush1.msra.mxu0 0.0
    %1359 = vmatprep.subr.mxu0 0.0
    %1360 = vmatpush1.msra.mxu0 0.0
    %1361 = vmatprep.subr.mxu0 0.0
    %1362 = vmatpush1.msra.mxu0 0.0
    %1363 = vmatprep.subr.mxu0 0.0
    %1364 = vmatpush1.msra.mxu0 0.0
    %1365 = vmatprep.subr.mxu0 0.0
    %1366 = vmatpush1.msra.mxu0 0.0
    %1367 = vmatprep.subr.mxu0 0.0
    %1368 = vmatpush1.msra.mxu0 0.0
    %1369 = vmatprep.subr.mxu0 0.0
    %1370 = vmatpush1.msra.mxu0 0.0
    %1371 = vmatprep.subr.mxu0 0.0
    %1372 = vmatpush1.msra.mxu0 0.0
    %1373 = vmatprep.subr.mxu0 0.0
    %1374 = vmatpush1.msra.mxu0 0.0
    %1375 = vmatprep.subr.mxu0 0.0
    %1376 = vmatpush1.msra.mxu0 0.0
    %1377 = vmatprep.subr.mxu0 0.0
    %1378 = vmatpush1.msra.mxu0 0.0
    %1379 = vmatprep.subr.mxu0 0.0
    %1380 = vmatpush1.msra.mxu0 0.0
    %1381 = vmatprep.subr.mxu0 0.0
    %1382 = vmatpush1.msra.mxu0 0.0
    %1383 = vmatprep.subr.mxu0 0.0
    %1384 = vmatpush1.msra.mxu0 0.0
    %1385 = vmatprep.subr.mxu0 0.0
    %1386 = vmatpush1.msra.mxu0 0.0
    %1387 = vmatprep.subr.mxu0 0.0
    %1388 = vmatpush1.msra.mxu0 0.0
    %1389 = vmatprep.subr.mxu0 0.0
    %1390 = vmatpush1.msra.mxu0 0.0
    %1391 = vmatprep.subr.mxu0 0.0
    %1392 = vmatpush1.msra.mxu0 0.0
    %1393 = vmatprep.subr.mxu0 0.0
    %1394 = vmatpush1.msra.mxu0 0.0
    %1395 = vmatprep.subr.mxu0 0.0
    %1396 = vmatpush1.msra.mxu0 0.0
    %1397 = vmatprep.subr.mxu0 0.0
    %1398 = vmatpush1.msra.mxu0 0.0
    %1399 = vmatprep.subr.mxu0 0.0
    %1400 = vmatpush1.msra.mxu0 0.0
    %1401 = vmatprep.subr.mxu0 0.0
    %1402 = vmatpush1.msra.mxu0 0.0
    %1403 = vmatprep.subr.mxu0 0.0
    %1404 = vmatpush1.msra.mxu0 0.0
    %1405 = vmatprep.subr.mxu0 0.0
    %1406 = vmatpush1.msra.mxu0 0.0
    %1407 = vmatprep.subr.mxu0 0.0
    %1408 = vmatpush1.msra.mxu0 0.0
    %1409 = vmatprep.mubr.f32.mxu0 0.0
    %1410 = vmatmul.mubr.f32.gmra.mrb[0].mxu0 %v1343
    %v1411 = vpop.f32.mrb[0].mxu0
    %v1412 = vadd.f32 %v199, %v1411
    %v1413 = vpop.f32.mrb[0].mxu0
    %1414 = vdwg.mxu0
    %v1415 = vmax.f32 %v1412, 0.0
    %v1417 = vsel %vm210, %v1415, 0
    %1419 = vmatprep.subr.mxu0 0.0
    %1420 = vmatpush1.msra.mxu0 %v190
    %1421 = vmatprep.subr.mxu0 0.0
    %1422 = vmatpush1.msra.mxu0 %v191
    %1423 = vmatprep.subr.mxu0 0.0
    %1424 = vmatpush1.msra.mxu0 %v192
    %1425 = vmatprep.subr.mxu0 0.0
    %1426 = vmatpush1.msra.mxu0 %v193
    %1427 = vmatprep.subr.mxu0 0.0
    %1428 = vmatpush1.msra.mxu0 0.0
    %1429 = vmatprep.subr.mxu0 0.0
    %1430 = vmatpush1.msra.mxu0 0.0
    %1431 = vmatprep.subr.mxu0 0.0
    %1432 = vmatpush1.msra.mxu0 0.0
    %1433 = vmatprep.subr.mxu0 0.0
    %1434 = vmatpush1.msra.mxu0 0.0
    %1435 = vmatprep.subr.mxu0 0.0
    %1436 = vmatpush1.msra.mxu0 0.0
    %1437 = vmatprep.subr.mxu0 0.0
    %1438 = vmatpush1.msra.mxu0 0.0
    %1439 = vmatprep.subr.mxu0 0.0
    %1440 = vmatpush1.msra.mxu0 0.0
    %1441 = vmatprep.subr.mxu0 0.0
    %1442 = vmatpush1.msra.mxu0 0.0
    %1443 = vmatprep.subr.mxu0 0.0
    %1444 = vmatpush1.msra.mxu0 0.0
    %1445 = vmatprep.subr.mxu0 0.0
    %1446 = vmatpush1.msra.mxu0 0.0
    %1447 = vmatprep.subr.mxu0 0.0
    %1448 = vmatpush1.msra.mxu0 0.0
    %1449 = vmatprep.subr.mxu0 0.0
    %1450 = vmatpush1.msra.mxu0 0.0
    %1451 = vmatprep.subr.mxu0 0.0
    %1452 = vmatpush1.msra.mxu0 0.0
    %1453 = vmatprep.subr.mxu0 0.0
    %1454 = vmatpush1.msra.mxu0 0.0
    %1455 = vmatprep.subr.mxu0 0.0
    %1456 = vmatpush1.msra.mxu0 0.0
    %1457 = vmatprep.subr.mxu0 0.0
    %1458 = vmatpush1.msra.mxu0 0.0
    %1459 = vmatprep.subr.mxu0 0.0
    %1460 = vmatpush1.msra.mxu0 0.0
    %1461 = vmatprep.subr.mxu0 0.0
    %1462 = vmatpush1.msra.mxu0 0.0
    %1463 = vmatprep.subr.mxu0 0.0
    %1464 = vmatpush1.msra.mxu0 0.0
    %1465 = vmatprep.subr.mxu0 0.0
    %1466 = vmatpush1.msra.mxu0 0.0
    %1467 = vmatprep.subr.mxu0 0.0
    %1468 = vmatpush1.msra.mxu0 0.0
    %1469 = vmatprep.subr.mxu0 0.0
    %1470 = vmatpush1.msra.mxu0 0.0
    %1471 = vmatprep.subr.mxu0 0.0
    %1472 = vmatpush1.msra.mxu0 0.0
    %1473 = vmatprep.subr.mxu0 0.0
    %1474 = vmatpush1.msra.mxu0 0.0
    %1475 = vmatprep.subr.mxu0 0.0
    %1476 = vmatpush1.msra.mxu0 0.0
    %1477 = vmatprep.subr.mxu0 0.0
    %1478 = vmatpush1.msra.mxu0 0.0
    %1479 = vmatprep.subr.mxu0 0.0
    %1480 = vmatpush1.msra.mxu0 0.0
    %1481 = vmatprep.subr.mxu0 0.0
    %1482 = vmatpush1.msra.mxu0 0.0
    %1483 = vmatprep.mubr.f32.mxu0 0.0
    %1484 = vmatmul.mubr.f32.gmra.mrb[0].mxu0 %v1417
    %v1485 = vpop.f32.mrb[0].mxu0
    %v1486 = vadd.f32 %v206, %v1485
    %v1487 = vpop.f32.mrb[0].mxu0
    %1488 = vdwg.mxu0
    %v1489 = vtanh.pop %v1486
    %v1490 = vrot.slane %v179, 6
    %v1493 = vsel %vm210, %v1489, 0
    %1495 = vmatprep.subr.mxu0 0.0
    %1496 = vmatpush1.msra.mxu0 %v182
    %1497 = vmatprep.subr.mxu0 0.0
    %1498 = vmatpush1.msra.mxu0 %v183
    %1499 = vmatprep.subr.mxu0 0.0
    %1500 = vmatpush1.msra.mxu0 %v184
    %1501 = vmatprep.subr.mxu0 0.0
    %1502 = vmatpush1.msra.mxu0 %v185
    %1503 = vmatprep.subr.mxu0 0.0
    %1504 = vmatpush1.msra.mxu0 0.0
    %1505 = vmatprep.subr.mxu0 0.0
    %1506 = vmatpush1.msra.mxu0 0.0
    %1507 = vmatprep.subr.mxu0 0.0
    %1508 = vmatpush1.msra.mxu0 0.0
    %1509 = vmatprep.subr.mxu0 0.0
    %1510 = vmatpush1.msra.mxu0 0.0
    %1511 = vmatprep.subr.mxu0 0.0
    %1512 = vmatpush1.msra.mxu0 0.0
    %1513 = vmatprep.subr.mxu0 0.0
    %1514 = vmatpush1.msra.mxu0 0.0
    %1515 = vmatprep.subr.mxu0 0.0
    %1516 = vmatpush1.msra.mxu0 0.0
    %1517 = vmatprep.subr.mxu0 0.0
    %1518 = vmatpush1.msra.mxu0 0.0
    %1519 = vmatprep.subr.mxu0 0.0
    %1520 = vmatpush1.msra.mxu0 0.0
    %1521 = vmatprep.subr.mxu0 0.0
    %1522 = vmatpush1.msra.mxu0 0.0
    %1523 = vmatprep.subr.mxu0 0.0
    %1524 = vmatpush1.msra.mxu0 0.0
    %1525 = vmatprep.subr.mxu0 0.0
    %1526 = vmatpush1.msra.mxu0 0.0
    %1527 = vmatprep.subr.mxu0 0.0
    %1528 = vmatpush1.msra.mxu0 0.0
    %1529 = vmatprep.subr.mxu0 0.0
    %1530 = vmatpush1.msra.mxu0 0.0
    %1531 = vmatprep.subr.mxu0 0.0
    %1532 = vmatpush1.msra.mxu0 0.0
    %1533 = vmatprep.subr.mxu0 0.0
    %1534 = vmatpush1.msra.mxu0 0.0
    %1535 = vmatprep.subr.mxu0 0.0
    %1536 = vmatpush1.msra.mxu0 0.0
    %1537 = vmatprep.subr.mxu0 0.0
    %1538 = vmatpush1.msra.mxu0 0.0
    %1539 = vmatprep.subr.mxu0 0.0
    %1540 = vmatpush1.msra.mxu0 0.0
    %1541 = vmatprep.subr.mxu0 0.0
    %1542 = vmatpush1.msra.mxu0 0.0
    %1543 = vmatprep.subr.mxu0 0.0
    %1544 = vmatpush1.msra.mxu0 0.0
    %1545 = vmatprep.subr.mxu0 0.0
    %1546 = vmatpush1.msra.mxu0 0.0
    %1547 = vmatprep.subr.mxu0 0.0
    %1548 = vmatpush1.msra.mxu0 0.0
    %1549 = vmatprep.subr.mxu0 0.0
    %1550 = vmatpush1.msra.mxu0 0.0
    %1551 = vmatprep.subr.mxu0 0.0
    %1552 = vmatpush1.msra.mxu0 0.0
    %1553 = vmatprep.subr.mxu0 0.0
    %1554 = vmatpush1.msra.mxu0 0.0
    %1555 = vmatprep.subr.mxu0 0.0
    %1556 = vmatpush1.msra.mxu0 0.0
    %1557 = vmatprep.subr.mxu0 0.0
    %1558 = vmatpush1.msra.mxu0 0.0
    %1559 = vmatprep.mubr.f32.mxu0 0.0
    %1560 = vmatmul.mubr.f32.gmra.mrb[0].mxu0 %v1493
    %v1561 = vpop.f32.mrb[0].mxu0
    %v1562 = vadd.f32 %v1490, %v1561
    %v1563 = vpop.f32.mrb[0].mxu0
    %1564 = vdwg.mxu0
    %v1565 = vmax.f32 %v1562, 0.0
    %v1567 = vsel %vm210, %v1565, 0
    %1569 = vmatprep.subr.mxu0 0.0
    %1570 = vmatpush1.msra.mxu0 %v186
    %1571 = vmatprep.subr.mxu0 0.0
    %1572 = vmatpush1.msra.mxu0 %v187
    %1573 = vmatprep.subr.mxu0 0.0
    %1574 = vmatpush1.msra.mxu0 %v188
    %1575 = vmatprep.subr.mxu0 0.0
    %1576 = vmatpush1.msra.mxu0 %v189
    %1577 = vmatprep.subr.mxu0 0.0
    %1578 = vmatpush1.msra.mxu0 0.0
    %1579 = vmatprep.subr.mxu0 0.0
    %1580 = vmatpush1.msra.mxu0 0.0
    %1581 = vmatprep.subr.mxu0 0.0
    %1582 = vmatpush1.msra.mxu0 0.0
    %1583 = vmatprep.subr.mxu0 0.0
    %1584 = vmatpush1.msra.mxu0 0.0
    %1585 = vmatprep.subr.mxu0 0.0
    %1586 = vmatpush1.msra.mxu0 0.0
    %1587 = vmatprep.subr.mxu0 0.0
    %1588 = vmatpush1.msra.mxu0 0.0
    %1589 = vmatprep.subr.mxu0 0.0
    %1590 = vmatpush1.msra.mxu0 0.0
    %1591 = vmatprep.subr.mxu0 0.0
    %1592 = vmatpush1.msra.mxu0 0.0
    %1593 = vmatprep.subr.mxu0 0.0
    %1594 = vmatpush1.msra.mxu0 0.0
    %1595 = vmatprep.subr.mxu0 0.0
    %1596 = vmatpush1.msra.mxu0 0.0
    %1597 = vmatprep.subr.mxu0 0.0
    %1598 = vmatpush1.msra.mxu0 0.0
    %1599 = vmatprep.subr.mxu0 0.0
    %1600 = vmatpush1.msra.mxu0 0.0
    %1601 = vmatprep.subr.mxu0 0.0
    %1602 = vmatpush1.msra.mxu0 0.0
    %1603 = vmatprep.subr.mxu0 0.0
    %1604 = vmatpush1.msra.mxu0 0.0
    %1605 = vmatprep.subr.mxu0 0.0
    %1606 = vmatpush1.msra.mxu0 0.0
    %1607 = vmatprep.subr.mxu0 0.0
    %1608 = vmatpush1.msra.mxu0 0.0
    %1609 = vmatprep.subr.mxu0 0.0
    %1610 = vmatpush1.msra.mxu0 0.0
    %1611 = vmatprep.subr.mxu0 0.0
    %1612 = vmatpush1.msra.mxu0 0.0
    %1613 = vmatprep.subr.mxu0 0.0
    %1614 = vmatpush1.msra.mxu0 0.0
    %1615 = vmatprep.subr.mxu0 0.0
    %1616 = vmatpush1.msra.mxu0 0.0
    %1617 = vmatprep.subr.mxu0 0.0
    %1618 = vmatpush1.msra.mxu0 0.0
    %1619 = vmatprep.subr.mxu0 0.0
    %1620 = vmatpush1.msra.mxu0 0.0
    %1621 = vmatprep.subr.mxu0 0.0
    %1622 = vmatpush1.msra.mxu0 0.0
    %1623 = vmatprep.subr.mxu0 0.0
    %1624 = vmatpush1.msra.mxu0 0.0
    %1625 = vmatprep.subr.mxu0 0.0
    %1626 = vmatpush1.msra.mxu0 0.0
    %1627 = vmatprep.subr.mxu0 0.0
    %1628 = vmatpush1.msra.mxu0 0.0
    %1629 = vmatprep.subr.mxu0 0.0
    %1630 = vmatpush1.msra.mxu0 0.0
    %1631 = vmatprep.subr.mxu0 0.0
    %1632 = vmatpush1.msra.mxu0 0.0
    %1633 = vmatprep.mubr.f32.mxu0 0.0
    %1634 = vmatmul.mubr.f32.gmra.mrb[0].mxu0 %v1567
    %v1635 = vpop.f32.mrb[0].mxu0
    %v1636 = vadd.f32 %v199, %v1635
    %v1637 = vpop.f32.mrb[0].mxu0
    %1638 = vdwg.mxu0
    %v1639 = vmax.f32 %v1636, 0.0
    %v1641 = vsel %vm210, %v1639, 0
    %1643 = vmatprep.subr.mxu0 0.0
    %1644 = vmatpush1.msra.mxu0 %v190
    %1645 = vmatprep.subr.mxu0 0.0
    %1646 = vmatpush1.msra.mxu0 %v191
    %1647 = vmatprep.subr.mxu0 0.0
    %1648 = vmatpush1.msra.mxu0 %v192
    %1649 = vmatprep.subr.mxu0 0.0
    %1650 = vmatpush1.msra.mxu0 %v193
    %1651 = vmatprep.subr.mxu0 0.0
    %1652 = vmatpush1.msra.mxu0 0.0
    %1653 = vmatprep.subr.mxu0 0.0
    %1654 = vmatpush1.msra.mxu0 0.0
    %1655 = vmatprep.subr.mxu0 0.0
    %1656 = vmatpush1.msra.mxu0 0.0
    %1657 = vmatprep.subr.mxu0 0.0
    %1658 = vmatpush1.msra.mxu0 0.0
    %1659 = vmatprep.subr.mxu0 0.0
    %1660 = vmatpush1.msra.mxu0 0.0
    %1661 = vmatprep.subr.mxu0 0.0
    %1662 = vmatpush1.msra.mxu0 0.0
    %1663 = vmatprep.subr.mxu0 0.0
    %1664 = vmatpush1.msra.mxu0 0.0
    %1665 = vmatprep.subr.mxu0 0.0
    %1666 = vmatpush1.msra.mxu0 0.0
    %1667 = vmatprep.subr.mxu0 0.0
    %1668 = vmatpush1.msra.mxu0 0.0
    %1669 = vmatprep.subr.mxu0 0.0
    %1670 = vmatpush1.msra.mxu0 0.0
    %1671 = vmatprep.subr.mxu0 0.0
    %1672 = vmatpush1.msra.mxu0 0.0
    %1673 = vmatprep.subr.mxu0 0.0
    %1674 = vmatpush1.msra.mxu0 0.0
    %1675 = vmatprep.subr.mxu0 0.0
    %1676 = vmatpush1.msra.mxu0 0.0
    %1677 = vmatprep.subr.mxu0 0.0
    %1678 = vmatpush1.msra.mxu0 0.0
    %1679 = vmatprep.subr.mxu0 0.0
    %1680 = vmatpush1.msra.mxu0 0.0
    %1681 = vmatprep.subr.mxu0 0.0
    %1682 = vmatpush1.msra.mxu0 0.0
    %1683 = vmatprep.subr.mxu0 0.0
    %1684 = vmatpush1.msra.mxu0 0.0
    %1685 = vmatprep.subr.mxu0 0.0
    %1686 = vmatpush1.msra.mxu0 0.0
    %1687 = vmatprep.subr.mxu0 0.0
    %1688 = vmatpush1.msra.mxu0 0.0
    %1689 = vmatprep.subr.mxu0 0.0
    %1690 = vmatpush1.msra.mxu0 0.0
    %1691 = vmatprep.subr.mxu0 0.0
    %1692 = vmatpush1.msra.mxu0 0.0
    %1693 = vmatprep.subr.mxu0 0.0
    %1694 = vmatpush1.msra.mxu0 0.0
    %1695 = vmatprep.subr.mxu0 0.0
    %1696 = vmatpush1.msra.mxu0 0.0
    %1697 = vmatprep.subr.mxu0 0.0
    %1698 = vmatpush1.msra.mxu0 0.0
    %1699 = vmatprep.subr.mxu0 0.0
    %1700 = vmatpush1.msra.mxu0 0.0
    %1701 = vmatprep.subr.mxu0 0.0
    %1702 = vmatpush1.msra.mxu0 0.0
    %1703 = vmatprep.subr.mxu0 0.0
    %1704 = vmatpush1.msra.mxu0 0.0
    %1705 = vmatprep.subr.mxu0 0.0
    %1706 = vmatpush1.msra.mxu0 0.0
    %1707 = vmatprep.mubr.f32.mxu0 0.0
    %1708 = vmatmul.mubr.f32.gmra.mrb[0].mxu0 %v1641
    %v1709 = vpop.f32.mrb[0].mxu0
    %v1710 = vadd.f32 %v206, %v1709
    %v1711 = vpop.f32.mrb[0].mxu0
    %1712 = vdwg.mxu0
    %v1713 = vtanh.pop %v1710
    %v1715 = vrot.slane %v584, 6
    %v1717 = vrot.slane %v736, 4
    %v1720 = vrot.slane %v961, 2
    %v1723 = vrot.slane %v1337, 6
    %v1725 = vrot.slane %v1489, 4
    %v1728 = vrot.slane %v1713, 2
    %vm1730 = vcmask 1041408
    %v1731 = vsel %vm1730, %v358, %v1715
    %vm1732 = vcmask 1043456
    %v1733 = vsel %vm1732, %v1731, %v1717
    %v1734 = vsel %vm103, %v1733, %v1720
    %v1735 = vsel %vm1730, %v1111, %v1723
    %v1736 = vsel %vm1732, %v1735, %v1725
    %v1737 = vsel %vm103, %v1736, %v1728
    %v1738 = vld [vmem:[#allocation8] sm:$0xff]
    %v1739 = vld [vmem:[#allocation8 + $0x8] sm:$0xff]
    %v1740 = vld [vmem:[#allocation8 + $0x10] sm:$0xff]
    %v1741 = vld [vmem:[#allocation8 + $0x18] sm:$0xff]
    %v1743 = vsel %vm210, %v1734, 0
    %v1746 = vsel %vm210, %v1737, 0
    %1748 = vmatprep.subr.mxu0 0.0
    %1749 = vmatpush1.msra.mxu0 %v1738
    %1750 = vmatprep.subr.mxu0 0.0
    %1751 = vmatpush1.msra.mxu0 %v1739
    %1752 = vmatprep.subr.mxu0 0.0
    %1753 = vmatpush1.msra.mxu0 %v1740
    %1754 = vmatprep.subr.mxu0 0.0
    %1755 = vmatpush1.msra.mxu0 %v1741
    %1756 = vmatprep.subr.mxu0 0.0
    %1757 = vmatpush1.msra.mxu0 0.0
    %1758 = vmatprep.subr.mxu0 0.0
    %1759 = vmatpush1.msra.mxu0 0.0
    %1760 = vmatprep.subr.mxu0 0.0
    %1761 = vmatpush1.msra.mxu0 0.0
    %1762 = vmatprep.subr.mxu0 0.0
    %1763 = vmatpush1.msra.mxu0 0.0
    %1764 = vmatprep.subr.mxu0 0.0
    %1765 = vmatpush1.msra.mxu0 0.0
    %1766 = vmatprep.subr.mxu0 0.0
    %1767 = vmatpush1.msra.mxu0 0.0
    %1768 = vmatprep.subr.mxu0 0.0
    %1769 = vmatpush1.msra.mxu0 0.0
    %1770 = vmatprep.subr.mxu0 0.0
    %1771 = vmatpush1.msra.mxu0 0.0
    %1772 = vmatprep.subr.mxu0 0.0
    %1773 = vmatpush1.msra.mxu0 0.0
    %1774 = vmatprep.subr.mxu0 0.0
    %1775 = vmatpush1.msra.mxu0 0.0
    %1776 = vmatprep.subr.mxu0 0.0
    %1777 = vmatpush1.msra.mxu0 0.0
    %1778 = vmatprep.subr.mxu0 0.0
    %1779 = vmatpush1.msra.mxu0 0.0
    %1780 = vmatprep.subr.mxu0 0.0
    %1781 = vmatpush1.msra.mxu0 0.0
    %1782 = vmatprep.subr.mxu0 0.0
    %1783 = vmatpush1.msra.mxu0 0.0
    %1784 = vmatprep.subr.mxu0 0.0
    %1785 = vmatpush1.msra.mxu0 0.0
    %1786 = vmatprep.subr.mxu0 0.0
    %1787 = vmatpush1.msra.mxu0 0.0
    %1788 = vmatprep.subr.mxu0 0.0
    %1789 = vmatpush1.msra.mxu0 0.0
    %1790 = vmatprep.subr.mxu0 0.0
    %1791 = vmatpush1.msra.mxu0 0.0
    %1792 = vmatprep.subr.mxu0 0.0
    %1793 = vmatpush1.msra.mxu0 0.0
    %1794 = vmatprep.subr.mxu0 0.0
    %1795 = vmatpush1.msra.mxu0 0.0
    %1796 = vmatprep.subr.mxu0 0.0
    %1797 = vmatpush1.msra.mxu0 0.0
    %1798 = vmatprep.subr.mxu0 0.0
    %1799 = vmatpush1.msra.mxu0 0.0
    %1800 = vmatprep.subr.mxu0 0.0
    %1801 = vmatpush1.msra.mxu0 0.0
    %1802 = vmatprep.subr.mxu0 0.0
    %1803 = vmatpush1.msra.mxu0 0.0
    %1804 = vmatprep.subr.mxu0 0.0
    %1805 = vmatpush1.msra.mxu0 0.0
    %1806 = vmatprep.subr.mxu0 0.0
    %1807 = vmatpush1.msra.mxu0 0.0
    %1808 = vmatprep.subr.mxu0 0.0
    %1809 = vmatpush1.msra.mxu0 0.0
    %1810 = vmatprep.subr.mxu0 0.0
    %1811 = vmatpush1.msra.mxu0 0.0
    %1812 = vmatprep.mubr.f32.mxu0 0.0
    %1813 = vmatmul.mubr.f32.gmra.mrb[0].mxu0 %v1743
    %v1814 = vpop.f32.mrb[0].mxu0
    %v1815 = vadd.f32 0.0, %v1814
    %v1816 = vpop.f32.mrb[0].mxu0
    %1817 = vmatprep.mubr.f32.mxu0 0.0
    %1818 = vmatmul.mubr.f32.gmra.mrb[0].mxu0 %v1746
    %v1819 = vpop.f32.mrb[0].mxu0
    %v1820 = vadd.f32 0.0, %v1819
    %v1821 = vpop.f32.mrb[0].mxu0
    %1822 = vdwg.mxu0
    %1823 = vst.msk [vmem:[#allocation10] sm:$0xff] %vm210, %v1815
    %1824 = vst.msk [vmem:[#allocation10 + $0x8] sm:$0xff] %vm210, %v1820
    // Predicated region
    $region54: #{tpu_custom_call.1} parent=1 // pred_check
      _
    $region55: #{tpu_custom_call.1} parent=1 // pred_check_branch
      %1826 = sbr.rel (0) target = $region57
    $region56: #{tpu_custom_call.1} parent=1 // pred_region
      %s1828 = ssub.s32 256, 256
      %1829 = vsyncadd [#allocation4], %s1828
      %s1830 = sshll.u32 [#allocation10], 4
      %s1831 = int_to_ptr.vmem [resolvable:$true] %s1830
      %1836 = dma.vmem_to_hbm [thread:$0]  %s1831, 256, %s9, [#allocation4], 128, 128, 8
    $region57: #{tpu_custom_call.1} parent=1 // pred_fallthru
      _
    // Predicated region
    $region58: #{tpu_custom_call.1} parent=1 // pred_check
      _
    $region59: #{tpu_custom_call.1} parent=1 // pred_check_branch
      %1838 = sbr.rel (0) target = $region61
    $region60: #{tpu_custom_call.1} parent=1 // pred_region
      %1839 = dma.done [#allocation4], 256
    $region61: #{tpu_custom_call.1} parent=1 // pred_fallthru
      _
    %1840 = vsyncpa [#allocation3], 1
    %1841 = vsyncpa [#allocation6], 1
    %1842 = vsyncpa [#allocation9], 1
    %1843 = vsyncpa [#allocation4], 1

</llo_original>
